<compile_context>
chip_gen: v6e
topology: v6e:2x2x1
jax: 0.10.0
libtpu: 0.0.40
codegen_flags: <defaults>
</compile_context>

<pallas_src>
import functools
import math

import jax
import jax.numpy as jnp
from jax.experimental import pallas as pl
from jax.experimental.pallas import tpu as pltpu


# ----------------------------------------------------------------------------
# helpers
# ----------------------------------------------------------------------------
def _round_up(x, m):
    return ((x + m - 1) // m) * m


def _choose_tile(dim, base, cap):
    """Pick (tile, padded_dim) with tile | padded_dim, tile % base == 0 or == padded."""
    padded = _round_up(dim, base)
    tile = min(cap, padded)
    padded = _round_up(padded, tile)
    return tile, padded


# ----------------------------------------------------------------------------
# Tiled matmul + bias (+ optional ReLU) kernel
# ----------------------------------------------------------------------------
def _matmul_bias_kernel(x_ref, w_ref, b_ref, o_ref, acc_ref, *, relu):
    @pl.when(pl.program_id(2) == 0)
    def _():
        acc_ref[...] = jnp.zeros_like(acc_ref)

    acc_ref[...] += jnp.dot(x_ref[...], w_ref[...],
                            preferred_element_type=jnp.float32)

    @pl.when(pl.program_id(2) == pl.num_programs(2) - 1)
    def _():
        y = acc_ref[...] + b_ref[...]
        if relu:
            y = jnp.maximum(y, 0.0)
        o_ref[...] = y.astype(o_ref.dtype)


def pallas_matmul_bias(x, w, b, relu=False):
    """x: (M, K) f32, w: (K, N) f32, b: (N,) f32 -> (M, N) f32.

    bf16 MXU inputs, f32 accumulation, K-reduction grid axis with VMEM scratch.
    """
    M, K = x.shape
    _, N = w.shape
    tm, Mp = _choose_tile(M, 8, 256)
    tk, Kp = _choose_tile(K, 8, 512)
    tn, Np = _choose_tile(N, 128, 256)   # lane-dense outputs

    xb = x.astype(jnp.bfloat16)
    wb = w.astype(jnp.bfloat16)
    bf = b.astype(jnp.float32).reshape(1, N)
    if (Mp, Kp) != (M, K):
        xb = jnp.pad(xb, ((0, Mp - M), (0, Kp - K)))
    if (Kp, Np) != (K, N):
        wb = jnp.pad(wb, ((0, Kp - K), (0, Np - N)))
    if Np != N:
        bf = jnp.pad(bf, ((0, 0), (0, Np - N)))

    out = pl.pallas_call(
        functools.partial(_matmul_bias_kernel, relu=relu),
        out_shape=jax.ShapeDtypeStruct((Mp, Np), jnp.float32),
        grid=(Mp // tm, Np // tn, Kp // tk),
        in_specs=[
            pl.BlockSpec((tm, tk), lambda i, j, k: (i, k)),
            pl.BlockSpec((tk, tn), lambda i, j, k: (k, j)),
            pl.BlockSpec((1, tn), lambda i, j, k: (0, j)),
        ],
        out_specs=pl.BlockSpec((tm, tn), lambda i, j, k: (i, j)),
        scratch_shapes=[pltpu.VMEM((tm, tn), jnp.float32)],
        compiler_params=pltpu.CompilerParams(
            dimension_semantics=("parallel", "parallel", "arbitrary")),
    )(xb, wb, bf)

    if (Mp, Np) != (M, N):
        out = out[:M, :N]
    return out


# ----------------------------------------------------------------------------
# Fused residual-add + LayerNorm kernel (row-tiled)
# ----------------------------------------------------------------------------
def _add_ln_kernel(x_ref, r_ref, g_ref, b_ref, o_ref, *, eps):
    x = x_ref[...].astype(jnp.float32) + r_ref[...].astype(jnp.float32)
    mean = jnp.mean(x, axis=-1, keepdims=True)
    var = jnp.mean(jnp.square(x - mean), axis=-1, keepdims=True)
    y = (x - mean) * jax.lax.rsqrt(var + eps)
    o_ref[...] = (y * g_ref[...] + b_ref[...]).astype(o_ref.dtype)


def pallas_add_layernorm(x, resid, gamma, beta, eps=1e-5):
    """LayerNorm(x + resid) over last axis. x/resid: (M, D)."""
    M, D = x.shape
    tm, Mp = _choose_tile(M, 8, 512)
    xp, rp = x, resid
    if Mp != M:
        xp = jnp.pad(x, ((0, Mp - M), (0, 0)))
        rp = jnp.pad(resid, ((0, Mp - M), (0, 0)))

    out = pl.pallas_call(
        functools.partial(_add_ln_kernel, eps=eps),
        out_shape=jax.ShapeDtypeStruct((Mp, D), x.dtype),
        grid=(Mp // tm,),
        in_specs=[
            pl.BlockSpec((tm, D), lambda i: (i, 0)),
            pl.BlockSpec((tm, D), lambda i: (i, 0)),
            pl.BlockSpec((1, D), lambda i: (0, 0)),
            pl.BlockSpec((1, D), lambda i: (0, 0)),
        ],
        out_specs=pl.BlockSpec((tm, D), lambda i: (i, 0)),
        compiler_params=pltpu.CompilerParams(dimension_semantics=("parallel",)),
    )(xp, rp, gamma.reshape(1, D), beta.reshape(1, D))

    if Mp != M:
        out = out[:M]
    return out


# ----------------------------------------------------------------------------
# Causal multi-head attention kernel: all heads of one batch element per step
# ----------------------------------------------------------------------------
def _attn_kernel(qkv_ref, o_ref, *, num_heads, d_model):
    S = o_ref.shape[1]
    Dh = d_model // num_heads
    scale = 1.0 / math.sqrt(Dh)

    # additive causal-mask bias, built once per grid step (shared by all heads)
    row = jax.lax.broadcasted_iota(jnp.int32, (S, S), 0)
    col = jax.lax.broadcasted_iota(jnp.int32, (S, S), 1)
    bias = jnp.where(col <= row, 0.0, -1e30).astype(jnp.float32)

    for h in range(num_heads):  # static unroll: one grid step covers all heads
        q = qkv_ref[0, :, pl.ds(h * Dh, Dh)].astype(jnp.bfloat16)
        k = qkv_ref[0, :, pl.ds(d_model + h * Dh, Dh)].astype(jnp.bfloat16)
        v = qkv_ref[0, :, pl.ds(2 * d_model + h * Dh, Dh)].astype(jnp.bfloat16)
        # (S, Dh) x (S, Dh) contracted over Dh -> (S, S), no explicit transpose
        s = jax.lax.dot_general(q, k, (((1,), (1,)), ((), ())),
                                preferred_element_type=jnp.float32)
        s = s * scale + bias
        s = s - jnp.max(s, axis=-1, keepdims=True)
        p = jnp.exp(s)
        p = p * pl.reciprocal(jnp.sum(p, axis=-1, keepdims=True), approx=True)
        o = jnp.dot(p.astype(jnp.bfloat16), v,
                    preferred_element_type=jnp.float32)
        o_ref[0, :, pl.ds(h * Dh, Dh)] = o.astype(o_ref.dtype)


def pallas_causal_attention(qkv, num_heads, d_model):
    """qkv: (B, S, 3*D) packed [q|k|v] per row -> (B, S, D)."""
    B, S, threeD = qkv.shape
    return pl.pallas_call(
        functools.partial(_attn_kernel, num_heads=num_heads, d_model=d_model),
        out_shape=jax.ShapeDtypeStruct((B, S, d_model), qkv.dtype),
        grid=(B,),
        in_specs=[pl.BlockSpec((1, S, threeD), lambda b: (b, 0, 0))],
        out_specs=pl.BlockSpec((1, S, d_model), lambda b: (b, 0, 0)),
        compiler_params=pltpu.CompilerParams(dimension_semantics=("parallel",)),
    )(qkv)


# ----------------------------------------------------------------------------
# Fused output projection + bias + softmax kernel
# ----------------------------------------------------------------------------
def _proj_softmax_kernel(x_ref, w_ref, b_ref, o_ref, acc_ref, *, valid_n):
    @pl.when(pl.program_id(1) == 0)
    def _():
        acc_ref[...] = jnp.zeros_like(acc_ref)

    acc_ref[...] += jnp.dot(x_ref[...], w_ref[...],
                            preferred_element_type=jnp.float32)

    @pl.when(pl.program_id(1) == pl.num_programs(1) - 1)
    def _():
        y = acc_ref[...] + b_ref[...]
        if valid_n < y.shape[1]:
            cols = jax.lax.broadcasted_iota(jnp.int32, y.shape, 1)
            y = jnp.where(cols < valid_n, y, -1e30)   # mask padded vocab cols
        y = y - jnp.max(y, axis=-1, keepdims=True)
        e = jnp.exp(y)
        # exact division for the externally-visible probabilities
        o_ref[...] = (e / jnp.sum(e, axis=-1, keepdims=True)).astype(o_ref.dtype)


def pallas_proj_softmax(x, w, b):
    """softmax(x @ w + b, axis=-1). x: (M, K), w: (K, V), b: (V,) -> (M, V)."""
    M, K = x.shape
    _, N = w.shape
    tm, Mp = _choose_tile(M, 8, 256)
    tk, Kp = _choose_tile(K, 8, 512)
    Np = _round_up(N, 128)   # whole (lane-dense) vocab row per block

    xb = x.astype(jnp.bfloat16)
    wb = w.astype(jnp.bfloat16)
    bf = b.astype(jnp.float32).reshape(1, N)
    if (Mp, Kp) != (M, K):
        xb = jnp.pad(xb, ((0, Mp - M), (0, Kp - K)))
    if (Kp, Np) != (K, N):
        wb = jnp.pad(wb, ((0, Kp - K), (0, Np - N)))
    if Np != N:
        bf = jnp.pad(bf, ((0, 0), (0, Np - N)))

    out = pl.pallas_call(
        functools.partial(_proj_softmax_kernel, valid_n=N),
        out_shape=jax.ShapeDtypeStruct((Mp, Np), jnp.float32),
        grid=(Mp // tm, Kp // tk),
        in_specs=[
            pl.BlockSpec((tm, tk), lambda i, k: (i, k)),
            pl.BlockSpec((tk, Np), lambda i, k: (k, 0)),
            pl.BlockSpec((1, Np), lambda i, k: (0, 0)),
        ],
        out_specs=pl.BlockSpec((tm, Np), lambda i, k: (i, 0)),
        scratch_shapes=[pltpu.VMEM((tm, Np), jnp.float32)],
        compiler_params=pltpu.CompilerParams(
            dimension_semantics=("parallel", "arbitrary")),
    )(xb, wb, bf)

    if (Mp, Np) != (M, N):
        out = out[:M, :N]
    return out


# ----------------------------------------------------------------------------
# Model glue (plain JAX)
# ----------------------------------------------------------------------------
def get_positional_embedding(seq_length, d_model):
    pos = jnp.arange(seq_length, dtype=jnp.float32)[:, None]           # (S, 1)
    i = jnp.arange(d_model // 2, dtype=jnp.float32)[None, :]           # (1, D/2)
    angle = pos / jnp.power(10000.0, (2.0 * i) / d_model)              # (S, D/2)
    pe = jnp.zeros((seq_length, d_model), dtype=jnp.float32)
    pe = pe.at[:, 0::2].set(jnp.sin(angle))
    pe = pe.at[:, 1::2].set(jnp.cos(angle))
    return pe                                                          # (S, D)


def encoder_block(p, x2, B, S, num_heads):
    BS, D = x2.shape

    # fused QKV projection: one matmul over x2, (D, 3D) weight
    qkv = pallas_matmul_bias(x2, p["w_qkv"], p["b_qkv"])               # (B*S, 3D)
    attn = pallas_causal_attention(qkv.reshape(B, S, 3 * D),
                                   num_heads, D)                       # (B, S, D)
    attn = pallas_matmul_bias(attn.reshape(BS, D), p["wo"], p["bo"])   # (B*S, D)

    h = pallas_add_layernorm(x2, attn, p["ln1_g"], p["ln1_b"])         # post-norm

    ff = pallas_matmul_bias(h, p["w1"], p["b1"], relu=True)
    ff = pallas_matmul_bias(ff, p["w2"], p["b2"])

    return pallas_add_layernorm(h, ff, p["ln2_g"], p["ln2_b"])


def gpt_forward(params, input_seq, *, seq_length, embedding_dim, d_model,
                num_heads):
    # token embedding gather (plain-JAX glue)
    tok = params["tok_emb"][input_seq]                                 # (B, S, D)
    pos = get_positional_embedding(seq_length, d_model)                # (S, D)
    # NOTE: reference scales (tok + pos) by sqrt(embedding_dim)
    x = (tok + pos[None, :, :]) * math.sqrt(embedding_dim)

    B, S, D = x.shape
    x2 = x.reshape(B * S, D)
    for layer_p in params["layers"]:
        x2 = encoder_block(layer_p, x2, B, S, num_heads)

    probs = pallas_proj_softmax(x2, params["out_w"], params["out_b"])  # (B*S, V)
    return probs.reshape(B, S, -1)


# ----------------------------------------------------------------------------
# Deterministic parameter init
# ----------------------------------------------------------------------------
def init_params(key, vocab_size, embedding_dim, d_model, n_layer, ffn_dim):
    keys = jax.random.split(key, 2 + n_layer)
    params = {
        "tok_emb": jax.random.normal(keys[0], (vocab_size, embedding_dim),
                                     jnp.float32) * 0.02,
        "out_w": jax.random.normal(keys[1], (d_model, vocab_size),
                                   jnp.float32) * 0.02,
        "out_b": jnp.zeros((vocab_size,), jnp.float32),
        "layers": [],
    }
    for li in range(n_layer):
        ks = jax.random.split(keys[2 + li], 8)
        D, F = d_model, ffn_dim
        wq = jax.random.normal(ks[0], (D, D), jnp.float32) * 0.02
        wk = jax.random.normal(ks[1], (D, D), jnp.float32) * 0.02
        wv = jax.random.normal(ks[2], (D, D), jnp.float32) * 0.02
        layer = {
            "w_qkv": jnp.concatenate([wq, wk, wv], axis=1),            # (D, 3D)
            "b_qkv": jnp.zeros((3 * D,), jnp.float32),
            "wo": jax.random.normal(ks[3], (D, D), jnp.float32) * 0.02,
            "bo": jnp.zeros((D,), jnp.float32),
            "w1": jax.random.normal(ks[4], (D, F), jnp.float32) * 0.02,
            "b1": jnp.zeros((F,), jnp.float32),
            "w2": jax.random.normal(ks[5], (F, D), jnp.float32) * 0.02,
            "b2": jnp.zeros((D,), jnp.float32),
            "ln1_g": jnp.ones((D,), jnp.float32),
            "ln1_b": jnp.zeros((D,), jnp.float32),
            "ln2_g": jnp.ones((D,), jnp.float32),
            "ln2_b": jnp.zeros((D,), jnp.float32),
        }
        params["layers"].append(layer)
    return params


# ----------------------------------------------------------------------------
# Main
# ----------------------------------------------------------------------------
if __name__ == "__main__":
    # small config (embedding_dim must equal d_model for tok+pos addition)
    batch = 2
    seq_length = 8
    vocab_size = 32
    embedding_dim = 32
    d_model = 32
    n_layer = 2
    num_heads = 4
    ffn_dim = 4 * d_model

    key = jax.random.PRNGKey(0)
    pkey, dkey = jax.random.split(key)
    params = init_params(pkey, vocab_size, embedding_dim, d_model, n_layer,
                         ffn_dim)

    input_seq = jax.random.randint(dkey, (batch, seq_length), 0, vocab_size,
                                   dtype=jnp.int32)

    fwd = jax.jit(functools.partial(
        gpt_forward,
        seq_length=seq_length,
        embedding_dim=embedding_dim,
        d_model=d_model,
        num_heads=num_heads,
    ))
    out = fwd(params, input_seq)
    jax.block_until_ready(out)

    assert out.shape == (batch, seq_length, vocab_size)
    # softmax rows should sum to ~1
    row_sums = jnp.sum(out, axis=-1)
    assert bool(jnp.allclose(row_sums, 1.0, atol=1e-4))
    assert bool(jnp.all(jnp.isfinite(out)))

    print("KERNEL_OK")
</pallas_src>

<mosaic_0001>
module attributes {stable_mosaic.version = 11 : i64} {
  func.func @_matmul_bias_kernel(%arg0: i32, %arg1: i32, %arg2: i32, %arg3: memref<16x32xbf16, #tpu.memory_space<vmem>>, %arg4: memref<32x128xbf16, #tpu.memory_space<vmem>>, %arg5: memref<1x128xf32, #tpu.memory_space<vmem>>, %arg6: memref<16x128xf32, #tpu.memory_space<vmem>>, %arg7: memref<16x128xf32, #tpu.memory_space<vmem>>) attributes {dimension_semantics = [#tpu.dimension_semantics<parallel>, #tpu.dimension_semantics<parallel>, #tpu.dimension_semantics<arbitrary>], iteration_bounds = array<i64: 1, 1, 1>, scalar_prefetch = 0 : i64, scratch_operands = 1 : i64, tpu.core_type = #tpu.core_type<tc>, window_params = [{transform_indices = @transform_0, window_bounds = array<i64: 16, 32>}, {transform_indices = @transform_1, window_bounds = array<i64: 32, 128>}, {transform_indices = @transform_2, window_bounds = array<i64: 1, 128>}, {transform_indices = @transform_3, window_bounds = array<i64: 16, 128>}]} {
    %c0_i32 = arith.constant 0 : i32
    %0 = arith.cmpi eq, %arg2, %c0_i32 : i32
    %1 = arith.extui %0 : i1 to i32
    %c0_i32_0 = arith.constant 0 : i32
    %2 = arith.cmpi ne, %1, %c0_i32_0 : i32
    scf.if %2 {
      %cst_10 = arith.constant 0.000000e+00 : f32
      %12 = vector.broadcast %cst_10 : f32 to vector<16x128xf32>
      %c0_11 = arith.constant 0 : index
      %c0_12 = arith.constant 0 : index
      %13 = vector.load %arg7[%c0_11, %c0_12] : memref<16x128xf32, #tpu.memory_space<vmem>>, vector<16x128xf32>
      tpu.vector_store %arg7[%c0_11, %c0_12], %12 {strides = array<i32>} : memref<16x128xf32, #tpu.memory_space<vmem>>, vector<16x128xf32>,
    } else {
    }
    %c0 = arith.constant 0 : index
    %c0_1 = arith.constant 0 : index
    %3 = vector.load %arg7[%c0, %c0_1] : memref<16x128xf32, #tpu.memory_space<vmem>>, vector<16x128xf32>
    %c0_2 = arith.constant 0 : index
    %c0_3 = arith.constant 0 : index
    %4 = vector.load %arg3[%c0_2, %c0_3] : memref<16x32xbf16, #tpu.memory_space<vmem>>, vector<16x32xbf16>
    %c0_4 = arith.constant 0 : index
    %c0_5 = arith.constant 0 : index
    %5 = vector.load %arg4[%c0_4, %c0_5] : memref<32x128xbf16, #tpu.memory_space<vmem>>, vector<32x128xbf16>
    %cst = arith.constant dense<0.000000e+00> : vector<16x128xf32>
    %6 = tpu.matmul %4, %5, %cst {dimension_numbers = #tpu.dot_dimension_numbers<[1], [0], [0], [1], [0, 0, 1, 1], [], []>} : vector<16x32xbf16>, vector<32x128xbf16>, vector<16x128xf32> -> vector<16x128xf32>
    %7 = arith.addf %3, %6 : vector<16x128xf32>
    %c0_6 = arith.constant 0 : index
    %c0_7 = arith.constant 0 : index
    %8 = vector.load %arg7[%c0_6, %c0_7] : memref<16x128xf32, #tpu.memory_space<vmem>>, vector<16x128xf32>
    tpu.vector_store %arg7[%c0_6, %c0_7], %7 {strides = array<i32>} : memref<16x128xf32, #tpu.memory_space<vmem>>, vector<16x128xf32>,
    %c0_i32_8 = arith.constant 0 : i32
    %9 = arith.cmpi eq, %arg2, %c0_i32_8 : i32
    %10 = arith.extui %9 : i1 to i32
    %c0_i32_9 = arith.constant 0 : i32
    %11 = arith.cmpi ne, %10, %c0_i32_9 : i32
    scf.if %11 {
      %c0_10 = arith.constant 0 : index
      %c0_11 = arith.constant 0 : index
      %12 = vector.load %arg7[%c0_10, %c0_11] : memref<16x128xf32, #tpu.memory_space<vmem>>, vector<16x128xf32>
      %c0_12 = arith.constant 0 : index
      %c0_13 = arith.constant 0 : index
      %13 = vector.load %arg5[%c0_12, %c0_13] : memref<1x128xf32, #tpu.memory_space<vmem>>, vector<1x128xf32>
      %14 = vector.broadcast %13 : vector<1x128xf32> to vector<16x128xf32>
      %15 = arith.addf %12, %14 : vector<16x128xf32>
      %c0_14 = arith.constant 0 : index
      %c0_15 = arith.constant 0 : index
      %16 = vector.load %arg6[%c0_14, %c0_15] : memref<16x128xf32, #tpu.memory_space<vmem>>, vector<16x128xf32>
      tpu.vector_store %arg6[%c0_14, %c0_15], %15 {strides = array<i32>} : memref<16x128xf32, #tpu.memory_space<vmem>>, vector<16x128xf32>,
    } else {
    }
    return
  }
  func.func @transform_0(%arg0: i32, %arg1: i32, %arg2: i32) -> (i32, i32) {
    %c0_i32 = arith.constant 0 : i32
    return %arg0, %arg2 : i32, i32
  }
  func.func @transform_1(%arg0: i32, %arg1: i32, %arg2: i32) -> (i32, i32) {
    %c0_i32 = arith.constant 0 : i32
    return %arg2, %arg1 : i32, i32
  }
  func.func @transform_2(%arg0: i32, %arg1: i32, %arg2: i32) -> (i32, i32) {
    %c0_i32 = arith.constant 0 : i32
    %c0_i32_0 = arith.constant 0 : i32
    return %c0_i32, %arg1 : i32, i32
  }
  func.func @transform_3(%arg0: i32, %arg1: i32, %arg2: i32) -> (i32, i32) {
    %c0_i32 = arith.constant 0 : i32
    return %arg0, %arg1 : i32, i32
  }
}

module attributes {stable_mosaic.version = 11 : i64} {
  func.func @_attn_kernel(%arg0: i32, %arg1: memref<1x8x96xf32, #tpu.memory_space<vmem>>, %arg2: memref<1x8x32xf32, #tpu.memory_space<vmem>>) attributes {dimension_semantics = [#tpu.dimension_semantics<parallel>], iteration_bounds = array<i64: 2>, scalar_prefetch = 0 : i64, scratch_operands = 0 : i64, tpu.core_type = #tpu.core_type<tc>, window_params = [{transform_indices = @transform_0, window_bounds = array<i64: 1, 8, 96>}, {transform_indices = @transform_1, window_bounds = array<i64: 1, 8, 32>}]} {
    %0 = tpu.iota {dimensions = array<i32: 0>} : vector<8x8xi32>
    %1 = tpu.iota {dimensions = array<i32: 1>} : vector<8x8xi32>
    %2 = arith.cmpi sle, %1, %0 : vector<8x8xi32>
    %cst = arith.constant 0.000000e+00 : f32
    %cst_0 = arith.constant -1.000000e+30 : f32
    %3 = vector.broadcast %cst : f32 to vector<8x8xf32>
    %4 = vector.broadcast %cst_0 : f32 to vector<8x8xf32>
    %5 = arith.select %2, %3, %4 : vector<8x8xi1>, vector<8x8xf32>
    %c0 = arith.constant 0 : index
    %c0_1 = arith.constant 0 : index
    %c0_2 = arith.constant 0 : index
    %6 = vector.load %arg1[%c0, %c0_1, %c0_2] : memref<1x8x96xf32, #tpu.memory_space<vmem>>, vector<1x8x8xf32>
    %7 = vector.shape_cast %6 : vector<1x8x8xf32> to vector<8x8xf32>
    %8 = arith.truncf %7 : vector<8x8xf32> to vector<8x8xbf16>
    %c0_3 = arith.constant 0 : index
    %c0_4 = arith.constant 0 : index
    %c32 = arith.constant 32 : index
    %9 = vector.load %arg1[%c0_3, %c0_4, %c32] : memref<1x8x96xf32, #tpu.memory_space<vmem>>, vector<1x8x8xf32>
    %10 = vector.shape_cast %9 : vector<1x8x8xf32> to vector<8x8xf32>
    %11 = arith.truncf %10 : vector<8x8xf32> to vector<8x8xbf16>
    %c0_5 = arith.constant 0 : index
    %c0_6 = arith.constant 0 : index
    %c64 = arith.constant 64 : index
    %12 = vector.load %arg1[%c0_5, %c0_6, %c64] : memref<1x8x96xf32, #tpu.memory_space<vmem>>, vector<1x8x8xf32>
    %13 = vector.shape_cast %12 : vector<1x8x8xf32> to vector<8x8xf32>
    %14 = arith.truncf %13 : vector<8x8xf32> to vector<8x8xbf16>
    %cst_7 = arith.constant dense<0.000000e+00> : vector<8x8xf32>
    %15 = tpu.matmul %8, %11, %cst_7 {dimension_numbers = #tpu.dot_dimension_numbers<[1], [1], [0], [0], [0, 0, 1, 0], [], []>} : vector<8x8xbf16>, vector<8x8xbf16>, vector<8x8xf32> -> vector<8x8xf32>
    %cst_8 = arith.constant 0.353553385 : f32
    %16 = vector.broadcast %cst_8 : f32 to vector<8x8xf32>
    %17 = arith.mulf %15, %16 : vector<8x8xf32>
    %18 = arith.addf %17, %5 : vector<8x8xf32>
    %cst_9 = arith.constant dense<0xFF800000> : vector<8xf32>
    %19 = vector.multi_reduction <maximumf>, %18, %cst_9 [1] : vector<8x8xf32> to vector<8xf32>
    %20 = vector.shape_cast %19 : vector<8xf32> to vector<8x1xf32>
    %21 = vector.broadcast %20 : vector<8x1xf32> to vector<8x8xf32>
    %22 = arith.subf %18, %21 : vector<8x8xf32>
    %23 = math.exp %22 : vector<8x8xf32>
    %cst_10 = arith.constant dense<0.000000e+00> : vector<8xf32>
    %24 = vector.multi_reduction <add>, %23, %cst_10 [1] : vector<8x8xf32> to vector<8xf32>
    %25 = vector.shape_cast %24 : vector<8xf32> to vector<8x1xf32>
    %26 = tpu.reciprocal %25 {approx = true} : vector<8x1xf32> -> vector<8x1xf32>
    %27 = vector.broadcast %26 : vector<8x1xf32> to vector<8x8xf32>
    %28 = arith.mulf %23, %27 : vector<8x8xf32>
    %29 = arith.truncf %28 : vector<8x8xf32> to vector<8x8xbf16>
    %cst_11 = arith.constant dense<0.000000e+00> : vector<8x8xf32>
    %30 = tpu.matmul %29, %14, %cst_11 {dimension_numbers = #tpu.dot_dimension_numbers<[1], [0], [0], [1], [0, 0, 1, 1], [], []>} : vector<8x8xbf16>, vector<8x8xbf16>, vector<8x8xf32> -> vector<8x8xf32>
    %c0_12 = arith.constant 0 : index
    %c0_13 = arith.constant 0 : index
    %c0_14 = arith.constant 0 : index
    %31 = vector.load %arg2[%c0_12, %c0_13, %c0_14] : memref<1x8x32xf32, #tpu.memory_space<vmem>>, vector<1x8x8xf32>
    %32 = vector.shape_cast %31 : vector<1x8x8xf32> to vector<8x8xf32>
    %33 = vector.shape_cast %30 : vector<8x8xf32> to vector<1x8x8xf32>
    tpu.vector_store %arg2[%c0_12, %c0_13, %c0_14], %33 {strides = array<i32>} : memref<1x8x32xf32, #tpu.memory_space<vmem>>, vector<1x8x8xf32>,
    %c0_15 = arith.constant 0 : index
    %c0_16 = arith.constant 0 : index
    %c8 = arith.constant 8 : index
    %34 = vector.load %arg1[%c0_15, %c0_16, %c8] : memref<1x8x96xf32, #tpu.memory_space<vmem>>, vector<1x8x8xf32>
    %35 = vector.shape_cast %34 : vector<1x8x8xf32> to vector<8x8xf32>
    %36 = arith.truncf %35 : vector<8x8xf32> to vector<8x8xbf16>
    %c0_17 = arith.constant 0 : index
    %c0_18 = arith.constant 0 : index
    %c40 = arith.constant 40 : index
    %37 = vector.load %arg1[%c0_17, %c0_18, %c40] : memref<1x8x96xf32, #tpu.memory_space<vmem>>, vector<1x8x8xf32>
    %38 = vector.shape_cast %37 : vector<1x8x8xf32> to vector<8x8xf32>
    %39 = arith.truncf %38 : vector<8x8xf32> to vector<8x8xbf16>
    %c0_19 = arith.constant 0 : index
    %c0_20 = arith.constant 0 : index
    %c72 = arith.constant 72 : index
    %40 = vector.load %arg1[%c0_19, %c0_20, %c72] : memref<1x8x96xf32, #tpu.memory_space<vmem>>, vector<1x8x8xf32>
    %41 = vector.shape_cast %40 : vector<1x8x8xf32> to vector<8x8xf32>
    %42 = arith.truncf %41 : vector<8x8xf32> to vector<8x8xbf16>
    %cst_21 = arith.constant dense<0.000000e+00> : vector<8x8xf32>
    %43 = tpu.matmul %36, %39, %cst_21 {dimension_numbers = #tpu.dot_dimension_numbers<[1], [1], [0], [0], [0, 0, 1, 0], [], []>} : vector<8x8xbf16>, vector<8x8xbf16>, vector<8x8xf32> -> vector<8x8xf32>
    %cst_22 = arith.constant 0.353553385 : f32
    %44 = vector.broadcast %cst_22 : f32 to vector<8x8xf32>
    %45 = arith.mulf %43, %44 : vector<8x8xf32>
    %46 = arith.addf %45, %5 : vector<8x8xf32>
    %cst_23 = arith.constant dense<0xFF800000> : vector<8xf32>
    %47 = vector.multi_reduction <maximumf>, %46, %cst_23 [1] : vector<8x8xf32> to vector<8xf32>
    %48 = vector.shape_cast %47 : vector<8xf32> to vector<8x1xf32>
    %49 = vector.broadcast %48 : vector<8x1xf32> to vector<8x8xf32>
    %50 = arith.subf %46, %49 : vector<8x8xf32>
    %51 = math.exp %50 : vector<8x8xf32>
    %cst_24 = arith.constant dense<0.000000e+00> : vector<8xf32>
    %52 = vector.multi_reduction <add>, %51, %cst_24 [1] : vector<8x8xf32> to vector<8xf32>
    %53 = vector.shape_cast %52 : vector<8xf32> to vector<8x1xf32>
    %54 = tpu.reciprocal %53 {approx = true} : vector<8x1xf32> -> vector<8x1xf32>
    %55 = vector.broadcast %54 : vector<8x1xf32> to vector<8x8xf32>
    %56 = arith.mulf %51, %55 : vector<8x8xf32>
    %57 = arith.truncf %56 : vector<8x8xf32> to vector<8x8xbf16>
    %cst_25 = arith.constant dense<0.000000e+00> : vector<8x8xf32>
    %58 = tpu.matmul %57, %42, %cst_25 {dimension_numbers = #tpu.dot_dimension_numbers<[1], [0], [0], [1], [0, 0, 1, 1], [], []>} : vector<8x8xbf16>, vector<8x8xbf16>, vector<8x8xf32> -> vector<8x8xf32>
    %c0_26 = arith.constant 0 : index
    %c0_27 = arith.constant 0 : index
    %c8_28 = arith.constant 8 : index
    %59 = vector.load %arg2[%c0_26, %c0_27, %c8_28] : memref<1x8x32xf32, #tpu.memory_space<vmem>>, vector<1x8x8xf32>
    %60 = vector.shape_cast %59 : vector<1x8x8xf32> to vector<8x8xf32>
    %61 = vector.shape_cast %58 : vector<8x8xf32> to vector<1x8x8xf32>
    tpu.vector_store %arg2[%c0_26, %c0_27, %c8_28], %61 {strides = array<i32>} : memref<1x8x32xf32, #tpu.memory_space<vmem>>, vector<1x8x8xf32>,
    %c0_29 = arith.constant 0 : index
    %c0_30 = arith.constant 0 : index
    %c16 = arith.constant 16 : index
    %62 = vector.load %arg1[%c0_29, %c0_30, %c16] : memref<1x8x96xf32, #tpu.memory_space<vmem>>, vector<1x8x8xf32>
    %63 = vector.shape_cast %62 : vector<1x8x8xf32> to vector<8x8xf32>
    %64 = arith.truncf %63 : vector<8x8xf32> to vector<8x8xbf16>
    %c0_31 = arith.constant 0 : index
    %c0_32 = arith.constant 0 : index
    %c48 = arith.constant 48 : index
    %65 = vector.load %arg1[%c0_31, %c0_32, %c48] : memref<1x8x96xf32, #tpu.memory_space<vmem>>, vector<1x8x8xf32>
    %66 = vector.shape_cast %65 : vector<1x8x8xf32> to vector<8x8xf32>
    %67 = arith.truncf %66 : vector<8x8xf32> to vector<8x8xbf16>
    %c0_33 = arith.constant 0 : index
    %c0_34 = arith.constant 0 : index
    %c80 = arith.constant 80 : index
    %68 = vector.load %arg1[%c0_33, %c0_34, %c80] : memref<1x8x96xf32, #tpu.memory_space<vmem>>, vector<1x8x8xf32>
    %69 = vector.shape_cast %68 : vector<1x8x8xf32> to vector<8x8xf32>
    %70 = arith.truncf %69 : vector<8x8xf32> to vector<8x8xbf16>
    %cst_35 = arith.constant dense<0.000000e+00> : vector<8x8xf32>
    %71 = tpu.matmul %64, %67, %cst_35 {dimension_numbers = #tpu.dot_dimension_numbers<[1], [1], [0], [0], [0, 0, 1, 0], [], []>} : vector<8x8xbf16>, vector<8x8xbf16>, vector<8x8xf32> -> vector<8x8xf32>
    %cst_36 = arith.constant 0.353553385 : f32
    %72 = vector.broadcast %cst_36 : f32 to vector<8x8xf32>
    %73 = arith.mulf %71, %72 : vector<8x8xf32>
    %74 = arith.addf %73, %5 : vector<8x8xf32>
    %cst_37 = arith.constant dense<0xFF800000> : vector<8xf32>
    %75 = vector.multi_reduction <maximumf>, %74, %cst_37 [1] : vector<8x8xf32> to vector<8xf32>
    %76 = vector.shape_cast %75 : vector<8xf32> to vector<8x1xf32>
    %77 = vector.broadcast %76 : vector<8x1xf32> to vector<8x8xf32>
    %78 = arith.subf %74, %77 : vector<8x8xf32>
    %79 = math.exp %78 : vector<8x8xf32>
    %cst_38 = arith.constant dense<0.000000e+00> : vector<8xf32>
    %80 = vector.multi_reduction <add>, %79, %cst_38 [1] : vector<8x8xf32> to vector<8xf32>
    %81 = vector.shape_cast %80 : vector<8xf32> to vector<8x1xf32>
    %82 = tpu.reciprocal %81 {approx = true} : vector<8x1xf32> -> vector<8x1xf32>
    %83 = vector.broadcast %82 : vector<8x1xf32> to vector<8x8xf32>
    %84 = arith.mulf %79, %83 : vector<8x8xf32>
    %85 = arith.truncf %84 : vector<8x8xf32> to vector<8x8xbf16>
    %cst_39 = arith.constant dense<0.000000e+00> : vector<8x8xf32>
    %86 = tpu.matmul %85, %70, %cst_39 {dimension_numbers = #tpu.dot_dimension_numbers<[1], [0], [0], [1], [0, 0, 1, 1], [], []>} : vector<8x8xbf16>, vector<8x8xbf16>, vector<8x8xf32> -> vector<8x8xf32>
    %c0_40 = arith.constant 0 : index
    %c0_41 = arith.constant 0 : index
    %c16_42 = arith.constant 16 : index
    %87 = vector.load %arg2[%c0_40, %c0_41, %c16_42] : memref<1x8x32xf32, #tpu.memory_space<vmem>>, vector<1x8x8xf32>
    %88 = vector.shape_cast %87 : vector<1x8x8xf32> to vector<8x8xf32>
    %89 = vector.shape_cast %86 : vector<8x8xf32> to vector<1x8x8xf32>
    tpu.vector_store %arg2[%c0_40, %c0_41, %c16_42], %89 {strides = array<i32>} : memref<1x8x32xf32, #tpu.memory_space<vmem>>, vector<1x8x8xf32>,
    %c0_43 = arith.constant 0 : index
    %c0_44 = arith.constant 0 : index
    %c24 = arith.constant 24 : index
    %90 = vector.load %arg1[%c0_43, %c0_44, %c24] : memref<1x8x96xf32, #tpu.memory_space<vmem>>, vector<1x8x8xf32>
    %91 = vector.shape_cast %90 : vector<1x8x8xf32> to vector<8x8xf32>
    %92 = arith.truncf %91 : vector<8x8xf32> to vector<8x8xbf16>
    %c0_45 = arith.constant 0 : index
    %c0_46 = arith.constant 0 : index
    %c56 = arith.constant 56 : index
    %93 = vector.load %arg1[%c0_45, %c0_46, %c56] : memref<1x8x96xf32, #tpu.memory_space<vmem>>, vector<1x8x8xf32>
    %94 = vector.shape_cast %93 : vector<1x8x8xf32> to vector<8x8xf32>
    %95 = arith.truncf %94 : vector<8x8xf32> to vector<8x8xbf16>
    %c0_47 = arith.constant 0 : index
    %c0_48 = arith.constant 0 : index
    %c88 = arith.constant 88 : index
    %96 = vector.load %arg1[%c0_47, %c0_48, %c88] : memref<1x8x96xf32, #tpu.memory_space<vmem>>, vector<1x8x8xf32>
    %97 = vector.shape_cast %96 : vector<1x8x8xf32> to vector<8x8xf32>
    %98 = arith.truncf %97 : vector<8x8xf32> to vector<8x8xbf16>
    %cst_49 = arith.constant dense<0.000000e+00> : vector<8x8xf32>
    %99 = tpu.matmul %92, %95, %cst_49 {dimension_numbers = #tpu.dot_dimension_numbers<[1], [1], [0], [0], [0, 0, 1, 0], [], []>} : vector<8x8xbf16>, vector<8x8xbf16>, vector<8x8xf32> -> vector<8x8xf32>
    %cst_50 = arith.constant 0.353553385 : f32
    %100 = vector.broadcast %cst_50 : f32 to vector<8x8xf32>
    %101 = arith.mulf %99, %100 : vector<8x8xf32>
    %102 = arith.addf %101, %5 : vector<8x8xf32>
    %cst_51 = arith.constant dense<0xFF800000> : vector<8xf32>
    %103 = vector.multi_reduction <maximumf>, %102, %cst_51 [1] : vector<8x8xf32> to vector<8xf32>
    %104 = vector.shape_cast %103 : vector<8xf32> to vector<8x1xf32>
    %105 = vector.broadcast %104 : vector<8x1xf32> to vector<8x8xf32>
    %106 = arith.subf %102, %105 : vector<8x8xf32>
    %107 = math.exp %106 : vector<8x8xf32>
    %cst_52 = arith.constant dense<0.000000e+00> : vector<8xf32>
    %108 = vector.multi_reduction <add>, %107, %cst_52 [1] : vector<8x8xf32> to vector<8xf32>
    %109 = vector.shape_cast %108 : vector<8xf32> to vector<8x1xf32>
    %110 = tpu.reciprocal %109 {approx = true} : vector<8x1xf32> -> vector<8x1xf32>
    %111 = vector.broadcast %110 : vector<8x1xf32> to vector<8x8xf32>
    %112 = arith.mulf %107, %111 : vector<8x8xf32>
    %113 = arith.truncf %112 : vector<8x8xf32> to vector<8x8xbf16>
    %cst_53 = arith.constant dense<0.000000e+00> : vector<8x8xf32>
    %114 = tpu.matmul %113, %98, %cst_53 {dimension_numbers = #tpu.dot_dimension_numbers<[1], [0], [0], [1], [0, 0, 1, 1], [], []>} : vector<8x8xbf16>, vector<8x8xbf16>, vector<8x8xf32> -> vector<8x8xf32>
    %c0_54 = arith.constant 0 : index
    %c0_55 = arith.constant 0 : index
    %c24_56 = arith.constant 24 : index
    %115 = vector.load %arg2[%c0_54, %c0_55, %c24_56] : memref<1x8x32xf32, #tpu.memory_space<vmem>>, vector<1x8x8xf32>
    %116 = vector.shape_cast %115 : vector<1x8x8xf32> to vector<8x8xf32>
    %117 = vector.shape_cast %114 : vector<8x8xf32> to vector<1x8x8xf32>
    tpu.vector_store %arg2[%c0_54, %c0_55, %c24_56], %117 {strides = array<i32>} : memref<1x8x32xf32, #tpu.memory_space<vmem>>, vector<1x8x8xf32>,
    return
  }
  func.func @transform_0(%arg0: i32) -> (i32, i32, i32) {
    %c0_i32 = arith.constant 0 : i32
    %c0_i32_0 = arith.constant 0 : i32
    %c0_i32_1 = arith.constant 0 : i32
    return %arg0, %c0_i32, %c0_i32_0 : i32, i32, i32
  }
  func.func @transform_1(%arg0: i32) -> (i32, i32, i32) {
    %c0_i32 = arith.constant 0 : i32
    %c0_i32_0 = arith.constant 0 : i32
    %c0_i32_1 = arith.constant 0 : i32
    return %arg0, %c0_i32, %c0_i32_0 : i32, i32, i32
  }
}

module attributes {stable_mosaic.version = 11 : i64} {
  func.func @_add_ln_kernel(%arg0: i32, %arg1: memref<16x32xf32, #tpu.memory_space<vmem>>, %arg2: memref<16x32xf32, #tpu.memory_space<vmem>>, %arg3: memref<1x32xf32, #tpu.memory_space<vmem>>, %arg4: memref<1x32xf32, #tpu.memory_space<vmem>>, %arg5: memref<16x32xf32, #tpu.memory_space<vmem>>) attributes {dimension_semantics = [#tpu.dimension_semantics<parallel>], iteration_bounds = array<i64: 1>, scalar_prefetch = 0 : i64, scratch_operands = 0 : i64, tpu.core_type = #tpu.core_type<tc>, window_params = [{transform_indices = @transform_0, window_bounds = array<i64: 16, 32>}, {transform_indices = @transform_1, window_bounds = array<i64: 16, 32>}, {pipeline_mode = #tpu.pipeline_mode<synchronous>, transform_indices = @transform_2, window_bounds = array<i64: 1, 32>}, {pipeline_mode = #tpu.pipeline_mode<synchronous>, transform_indices = @transform_3, window_bounds = array<i64: 1, 32>}, {transform_indices = @transform_4, window_bounds = array<i64: 16, 32>}]} {
    %c0 = arith.constant 0 : index
    %c0_0 = arith.constant 0 : index
    %0 = vector.load %arg1[%c0, %c0_0] : memref<16x32xf32, #tpu.memory_space<vmem>>, vector<16x32xf32>
    %c0_1 = arith.constant 0 : index
    %c0_2 = arith.constant 0 : index
    %1 = vector.load %arg2[%c0_1, %c0_2] : memref<16x32xf32, #tpu.memory_space<vmem>>, vector<16x32xf32>
    %2 = arith.addf %0, %1 : vector<16x32xf32>
    %cst = arith.constant dense<0.000000e+00> : vector<16xf32>
    %3 = vector.multi_reduction <add>, %2, %cst [1] : vector<16x32xf32> to vector<16xf32>
    %4 = vector.shape_cast %3 : vector<16xf32> to vector<16x1xf32>
    %cst_3 = arith.constant 3.200000e+01 : f32
    %5 = vector.broadcast %cst_3 : f32 to vector<16x1xf32>
    %6 = arith.divf %4, %5 : vector<16x1xf32>
    %7 = vector.broadcast %6 : vector<16x1xf32> to vector<16x32xf32>
    %8 = arith.subf %2, %7 : vector<16x32xf32>
    %9 = arith.mulf %8, %8 : vector<16x32xf32>
    %cst_4 = arith.constant dense<0.000000e+00> : vector<16xf32>
    %10 = vector.multi_reduction <add>, %9, %cst_4 [1] : vector<16x32xf32> to vector<16xf32>
    %11 = vector.shape_cast %10 : vector<16xf32> to vector<16x1xf32>
    %cst_5 = arith.constant 3.200000e+01 : f32
    %12 = vector.broadcast %cst_5 : f32 to vector<16x1xf32>
    %13 = arith.divf %11, %12 : vector<16x1xf32>
    %14 = vector.broadcast %6 : vector<16x1xf32> to vector<16x32xf32>
    %15 = arith.subf %2, %14 : vector<16x32xf32>
    %cst_6 = arith.constant 9.99999974E-6 : f32
    %16 = vector.broadcast %cst_6 : f32 to vector<16x1xf32>
    %17 = arith.addf %13, %16 : vector<16x1xf32>
    %18 = math.rsqrt %17 : vector<16x1xf32>
    %19 = vector.broadcast %18 : vector<16x1xf32> to vector<16x32xf32>
    %20 = arith.mulf %15, %19 : vector<16x32xf32>
    %c0_7 = arith.constant 0 : index
    %c0_8 = arith.constant 0 : index
    %21 = vector.load %arg3[%c0_7, %c0_8] : memref<1x32xf32, #tpu.memory_space<vmem>>, vector<1x32xf32>
    %22 = vector.broadcast %21 : vector<1x32xf32> to vector<16x32xf32>
    %23 = arith.mulf %20, %22 : vector<16x32xf32>
    %c0_9 = arith.constant 0 : index
    %c0_10 = arith.constant 0 : index
    %24 = vector.load %arg4[%c0_9, %c0_10] : memref<1x32xf32, #tpu.memory_space<vmem>>, vector<1x32xf32>
    %25 = vector.broadcast %24 : vector<1x32xf32> to vector<16x32xf32>
    %26 = arith.addf %23, %25 : vector<16x32xf32>
    %c0_11 = arith.constant 0 : index
    %c0_12 = arith.constant 0 : index
    %27 = vector.load %arg5[%c0_11, %c0_12] : memref<16x32xf32, #tpu.memory_space<vmem>>, vector<16x32xf32>
    tpu.vector_store %arg5[%c0_11, %c0_12], %26 {strides = array<i32>} : memref<16x32xf32, #tpu.memory_space<vmem>>, vector<16x32xf32>,
    return
  }
  func.func @transform_0(%arg0: i32) -> (i32, i32) {
    %c0_i32 = arith.constant 0 : i32
    %c0_i32_0 = arith.constant 0 : i32
    return %arg0, %c0_i32 : i32, i32
  }
  func.func @transform_1(%arg0: i32) -> (i32, i32) {
    %c0_i32 = arith.constant 0 : i32
    %c0_i32_0 = arith.constant 0 : i32
    return %arg0, %c0_i32 : i32, i32
  }
  func.func @transform_2(%arg0: i32) -> (i32, i32) {
    %c0_i32 = arith.constant 0 : i32
    %c0_i32_0 = arith.constant 0 : i32
    %c0_i32_1 = arith.constant 0 : i32
    return %c0_i32, %c0_i32_0 : i32, i32
  }
  func.func @transform_3(%arg0: i32) -> (i32, i32) {
    %c0_i32 = arith.constant 0 : i32
    %c0_i32_0 = arith.constant 0 : i32
    %c0_i32_1 = arith.constant 0 : i32
    return %c0_i32, %c0_i32_0 : i32, i32
  }
  func.func @transform_4(%arg0: i32) -> (i32, i32) {
    %c0_i32 = arith.constant 0 : i32
    %c0_i32_0 = arith.constant 0 : i32
    return %arg0, %c0_i32 : i32, i32
  }
}

module attributes {stable_mosaic.version = 11 : i64} {
  func.func @_matmul_bias_kernel(%arg0: i32, %arg1: i32, %arg2: i32, %arg3: memref<16x32xbf16, #tpu.memory_space<vmem>>, %arg4: memref<32x128xbf16, #tpu.memory_space<vmem>>, %arg5: memref<1x128xf32, #tpu.memory_space<vmem>>, %arg6: memref<16x128xf32, #tpu.memory_space<vmem>>, %arg7: memref<16x128xf32, #tpu.memory_space<vmem>>) attributes {dimension_semantics = [#tpu.dimension_semantics<parallel>, #tpu.dimension_semantics<parallel>, #tpu.dimension_semantics<arbitrary>], iteration_bounds = array<i64: 1, 1, 1>, scalar_prefetch = 0 : i64, scratch_operands = 1 : i64, tpu.core_type = #tpu.core_type<tc>, window_params = [{transform_indices = @transform_0, window_bounds = array<i64: 16, 32>}, {transform_indices = @transform_1, window_bounds = array<i64: 32, 128>}, {transform_indices = @transform_2, window_bounds = array<i64: 1, 128>}, {transform_indices = @transform_3, window_bounds = array<i64: 16, 128>}]} {
    %c0_i32 = arith.constant 0 : i32
    %0 = arith.cmpi eq, %arg2, %c0_i32 : i32
    %1 = arith.extui %0 : i1 to i32
    %c0_i32_0 = arith.constant 0 : i32
    %2 = arith.cmpi ne, %1, %c0_i32_0 : i32
    scf.if %2 {
      %cst_10 = arith.constant 0.000000e+00 : f32
      %12 = vector.broadcast %cst_10 : f32 to vector<16x128xf32>
      %c0_11 = arith.constant 0 : index
      %c0_12 = arith.constant 0 : index
      %13 = vector.load %arg7[%c0_11, %c0_12] : memref<16x128xf32, #tpu.memory_space<vmem>>, vector<16x128xf32>
      tpu.vector_store %arg7[%c0_11, %c0_12], %12 {strides = array<i32>} : memref<16x128xf32, #tpu.memory_space<vmem>>, vector<16x128xf32>,
    } else {
    }
    %c0 = arith.constant 0 : index
    %c0_1 = arith.constant 0 : index
    %3 = vector.load %arg7[%c0, %c0_1] : memref<16x128xf32, #tpu.memory_space<vmem>>, vector<16x128xf32>
    %c0_2 = arith.constant 0 : index
    %c0_3 = arith.constant 0 : index
    %4 = vector.load %arg3[%c0_2, %c0_3] : memref<16x32xbf16, #tpu.memory_space<vmem>>, vector<16x32xbf16>
    %c0_4 = arith.constant 0 : index
    %c0_5 = arith.constant 0 : index
    %5 = vector.load %arg4[%c0_4, %c0_5] : memref<32x128xbf16, #tpu.memory_space<vmem>>, vector<32x128xbf16>
    %cst = arith.constant dense<0.000000e+00> : vector<16x128xf32>
    %6 = tpu.matmul %4, %5, %cst {dimension_numbers = #tpu.dot_dimension_numbers<[1], [0], [0], [1], [0, 0, 1, 1], [], []>} : vector<16x32xbf16>, vector<32x128xbf16>, vector<16x128xf32> -> vector<16x128xf32>
    %7 = arith.addf %3, %6 : vector<16x128xf32>
    %c0_6 = arith.constant 0 : index
    %c0_7 = arith.constant 0 : index
    %8 = vector.load %arg7[%c0_6, %c0_7] : memref<16x128xf32, #tpu.memory_space<vmem>>, vector<16x128xf32>
    tpu.vector_store %arg7[%c0_6, %c0_7], %7 {strides = array<i32>} : memref<16x128xf32, #tpu.memory_space<vmem>>, vector<16x128xf32>,
    %c0_i32_8 = arith.constant 0 : i32
    %9 = arith.cmpi eq, %arg2, %c0_i32_8 : i32
    %10 = arith.extui %9 : i1 to i32
    %c0_i32_9 = arith.constant 0 : i32
    %11 = arith.cmpi ne, %10, %c0_i32_9 : i32
    scf.if %11 {
      %c0_10 = arith.constant 0 : index
      %c0_11 = arith.constant 0 : index
      %12 = vector.load %arg7[%c0_10, %c0_11] : memref<16x128xf32, #tpu.memory_space<vmem>>, vector<16x128xf32>
      %c0_12 = arith.constant 0 : index
      %c0_13 = arith.constant 0 : index
      %13 = vector.load %arg5[%c0_12, %c0_13] : memref<1x128xf32, #tpu.memory_space<vmem>>, vector<1x128xf32>
      %14 = vector.broadcast %13 : vector<1x128xf32> to vector<16x128xf32>
      %15 = arith.addf %12, %14 : vector<16x128xf32>
      %cst_14 = arith.constant 0.000000e+00 : f32
      %16 = vector.broadcast %cst_14 : f32 to vector<16x128xf32>
      %17 = arith.maximumf %15, %16 : vector<16x128xf32>
      %c0_15 = arith.constant 0 : index
      %c0_16 = arith.constant 0 : index
      %18 = vector.load %arg6[%c0_15, %c0_16] : memref<16x128xf32, #tpu.memory_space<vmem>>, vector<16x128xf32>
      tpu.vector_store %arg6[%c0_15, %c0_16], %17 {strides = array<i32>} : memref<16x128xf32, #tpu.memory_space<vmem>>, vector<16x128xf32>,
    } else {
    }
    return
  }
  func.func @transform_0(%arg0: i32, %arg1: i32, %arg2: i32) -> (i32, i32) {
    %c0_i32 = arith.constant 0 : i32
    return %arg0, %arg2 : i32, i32
  }
  func.func @transform_1(%arg0: i32, %arg1: i32, %arg2: i32) -> (i32, i32) {
    %c0_i32 = arith.constant 0 : i32
    return %arg2, %arg1 : i32, i32
  }
  func.func @transform_2(%arg0: i32, %arg1: i32, %arg2: i32) -> (i32, i32) {
    %c0_i32 = arith.constant 0 : i32
    %c0_i32_0 = arith.constant 0 : i32
    return %c0_i32, %arg1 : i32, i32
  }
  func.func @transform_3(%arg0: i32, %arg1: i32, %arg2: i32) -> (i32, i32) {
    %c0_i32 = arith.constant 0 : i32
    return %arg0, %arg1 : i32, i32
  }
}

module attributes {stable_mosaic.version = 11 : i64} {
  func.func @_proj_softmax_kernel(%arg0: i32, %arg1: i32, %arg2: memref<16x32xbf16, #tpu.memory_space<vmem>>, %arg3: memref<32x128xbf16, #tpu.memory_space<vmem>>, %arg4: memref<1x128xf32, #tpu.memory_space<vmem>>, %arg5: memref<16x128xf32, #tpu.memory_space<vmem>>, %arg6: memref<16x128xf32, #tpu.memory_space<vmem>>) attributes {dimension_semantics = [#tpu.dimension_semantics<parallel>, #tpu.dimension_semantics<arbitrary>], iteration_bounds = array<i64: 1, 1>, scalar_prefetch = 0 : i64, scratch_operands = 1 : i64, tpu.core_type = #tpu.core_type<tc>, window_params = [{transform_indices = @transform_0, window_bounds = array<i64: 16, 32>}, {transform_indices = @transform_1, window_bounds = array<i64: 32, 128>}, {pipeline_mode = #tpu.pipeline_mode<synchronous>, transform_indices = @transform_2, window_bounds = array<i64: 1, 128>}, {transform_indices = @transform_3, window_bounds = array<i64: 16, 128>}]} {
    %c0_i32 = arith.constant 0 : i32
    %0 = arith.cmpi eq, %arg1, %c0_i32 : i32
    %1 = arith.extui %0 : i1 to i32
    %c0_i32_0 = arith.constant 0 : i32
    %2 = arith.cmpi ne, %1, %c0_i32_0 : i32
    scf.if %2 {
      %cst_10 = arith.constant 0.000000e+00 : f32
      %12 = vector.broadcast %cst_10 : f32 to vector<16x128xf32>
      %c0_11 = arith.constant 0 : index
      %c0_12 = arith.constant 0 : index
      %13 = vector.load %arg6[%c0_11, %c0_12] : memref<16x128xf32, #tpu.memory_space<vmem>>, vector<16x128xf32>
      tpu.vector_store %arg6[%c0_11, %c0_12], %12 {strides = array<i32>} : memref<16x128xf32, #tpu.memory_space<vmem>>, vector<16x128xf32>,
    } else {
    }
    %c0 = arith.constant 0 : index
    %c0_1 = arith.constant 0 : index
    %3 = vector.load %arg6[%c0, %c0_1] : memref<16x128xf32, #tpu.memory_space<vmem>>, vector<16x128xf32>
    %c0_2 = arith.constant 0 : index
    %c0_3 = arith.constant 0 : index
    %4 = vector.load %arg2[%c0_2, %c0_3] : memref<16x32xbf16, #tpu.memory_space<vmem>>, vector<16x32xbf16>
    %c0_4 = arith.constant 0 : index
    %c0_5 = arith.constant 0 : index
    %5 = vector.load %arg3[%c0_4, %c0_5] : memref<32x128xbf16, #tpu.memory_space<vmem>>, vector<32x128xbf16>
    %cst = arith.constant dense<0.000000e+00> : vector<16x128xf32>
    %6 = tpu.matmul %4, %5, %cst {dimension_numbers = #tpu.dot_dimension_numbers<[1], [0], [0], [1], [0, 0, 1, 1], [], []>} : vector<16x32xbf16>, vector<32x128xbf16>, vector<16x128xf32> -> vector<16x128xf32>
    %7 = arith.addf %3, %6 : vector<16x128xf32>
    %c0_6 = arith.constant 0 : index
    %c0_7 = arith.constant 0 : index
    %8 = vector.load %arg6[%c0_6, %c0_7] : memref<16x128xf32, #tpu.memory_space<vmem>>, vector<16x128xf32>
    tpu.vector_store %arg6[%c0_6, %c0_7], %7 {strides = array<i32>} : memref<16x128xf32, #tpu.memory_space<vmem>>, vector<16x128xf32>,
    %c0_i32_8 = arith.constant 0 : i32
    %9 = arith.cmpi eq, %arg1, %c0_i32_8 : i32
    %10 = arith.extui %9 : i1 to i32
    %c0_i32_9 = arith.constant 0 : i32
    %11 = arith.cmpi ne, %10, %c0_i32_9 : i32
    scf.if %11 {
      %c0_10 = arith.constant 0 : index
      %c0_11 = arith.constant 0 : index
      %12 = vector.load %arg6[%c0_10, %c0_11] : memref<16x128xf32, #tpu.memory_space<vmem>>, vector<16x128xf32>
      %c0_12 = arith.constant 0 : index
      %c0_13 = arith.constant 0 : index
      %13 = vector.load %arg4[%c0_12, %c0_13] : memref<1x128xf32, #tpu.memory_space<vmem>>, vector<1x128xf32>
      %14 = vector.broadcast %13 : vector<1x128xf32> to vector<16x128xf32>
      %15 = arith.addf %12, %14 : vector<16x128xf32>
      %16 = tpu.iota {dimensions = array<i32: 1>} : vector<16x128xi32>
      %c32_i32 = arith.constant 32 : i32
      %17 = vector.broadcast %c32_i32 : i32 to vector<16x128xi32>
      %18 = arith.cmpi slt, %16, %17 : vector<16x128xi32>
      %cst_14 = arith.constant -1.000000e+30 : f32
      %19 = vector.broadcast %cst_14 : f32 to vector<16x128xf32>
      %20 = arith.select %18, %15, %19 : vector<16x128xi1>, vector<16x128xf32>
      %cst_15 = arith.constant dense<0xFF800000> : vector<16xf32>
      %21 = vector.multi_reduction <maximumf>, %20, %cst_15 [1] : vector<16x128xf32> to vector<16xf32>
      %22 = vector.shape_cast %21 : vector<16xf32> to vector<16x1xf32>
      %23 = vector.broadcast %22 : vector<16x1xf32> to vector<16x128xf32>
      %24 = arith.subf %20, %23 : vector<16x128xf32>
      %25 = math.exp %24 : vector<16x128xf32>
      %cst_16 = arith.constant dense<0.000000e+00> : vector<16xf32>
      %26 = vector.multi_reduction <add>, %25, %cst_16 [1] : vector<16x128xf32> to vector<16xf32>
      %27 = vector.shape_cast %26 : vector<16xf32> to vector<16x1xf32>
      %28 = vector.broadcast %27 : vector<16x1xf32> to vector<16x128xf32>
      %29 = arith.divf %25, %28 : vector<16x128xf32>
      %c0_17 = arith.constant 0 : index
      %c0_18 = arith.constant 0 : index
      %30 = vector.load %arg5[%c0_17, %c0_18] : memref<16x128xf32, #tpu.memory_space<vmem>>, vector<16x128xf32>
      tpu.vector_store %arg5[%c0_17, %c0_18], %29 {strides = array<i32>} : memref<16x128xf32, #tpu.memory_space<vmem>>, vector<16x128xf32>,
    } else {
    }
    return
  }
  func.func @transform_0(%arg0: i32, %arg1: i32) -> (i32, i32) {
    %c0_i32 = arith.constant 0 : i32
    return %arg0, %arg1 : i32, i32
  }
  func.func @transform_1(%arg0: i32, %arg1: i32) -> (i32, i32) {
    %c0_i32 = arith.constant 0 : i32
    %c0_i32_0 = arith.constant 0 : i32
    return %arg1, %c0_i32 : i32, i32
  }
  func.func @transform_2(%arg0: i32, %arg1: i32) -> (i32, i32) {
    %c0_i32 = arith.constant 0 : i32
    %c0_i32_0 = arith.constant 0 : i32
    %c0_i32_1 = arith.constant 0 : i32
    return %c0_i32, %c0_i32_0 : i32, i32
  }
  func.func @transform_3(%arg0: i32, %arg1: i32) -> (i32, i32) {
    %c0_i32 = arith.constant 0 : i32
    %c0_i32_0 = arith.constant 0 : i32
    return %arg0, %c0_i32 : i32, i32
  }
}

module attributes {stable_mosaic.version = 11 : i64} {
  func.func @_matmul_bias_kernel(%arg0: i32, %arg1: i32, %arg2: i32, %arg3: memref<16x128xbf16, #tpu.memory_space<vmem>>, %arg4: memref<128x128xbf16, #tpu.memory_space<vmem>>, %arg5: memref<1x128xf32, #tpu.memory_space<vmem>>, %arg6: memref<16x128xf32, #tpu.memory_space<vmem>>, %arg7: memref<16x128xf32, #tpu.memory_space<vmem>>) attributes {dimension_semantics = [#tpu.dimension_semantics<parallel>, #tpu.dimension_semantics<parallel>, #tpu.dimension_semantics<arbitrary>], iteration_bounds = array<i64: 1, 1, 1>, scalar_prefetch = 0 : i64, scratch_operands = 1 : i64, tpu.core_type = #tpu.core_type<tc>, window_params = [{transform_indices = @transform_0, window_bounds = array<i64: 16, 128>}, {transform_indices = @transform_1, window_bounds = array<i64: 128, 128>}, {transform_indices = @transform_2, window_bounds = array<i64: 1, 128>}, {transform_indices = @transform_3, window_bounds = array<i64: 16, 128>}]} {
    %c0_i32 = arith.constant 0 : i32
    %0 = arith.cmpi eq, %arg2, %c0_i32 : i32
    %1 = arith.extui %0 : i1 to i32
    %c0_i32_0 = arith.constant 0 : i32
    %2 = arith.cmpi ne, %1, %c0_i32_0 : i32
    scf.if %2 {
      %cst_10 = arith.constant 0.000000e+00 : f32
      %12 = vector.broadcast %cst_10 : f32 to vector<16x128xf32>
      %c0_11 = arith.constant 0 : index
      %c0_12 = arith.constant 0 : index
      %13 = vector.load %arg7[%c0_11, %c0_12] : memref<16x128xf32, #tpu.memory_space<vmem>>, vector<16x128xf32>
      tpu.vector_store %arg7[%c0_11, %c0_12], %12 {strides = array<i32>} : memref<16x128xf32, #tpu.memory_space<vmem>>, vector<16x128xf32>,
    } else {
    }
    %c0 = arith.constant 0 : index
    %c0_1 = arith.constant 0 : index
    %3 = vector.load %arg7[%c0, %c0_1] : memref<16x128xf32, #tpu.memory_space<vmem>>, vector<16x128xf32>
    %c0_2 = arith.constant 0 : index
    %c0_3 = arith.constant 0 : index
    %4 = vector.load %arg3[%c0_2, %c0_3] : memref<16x128xbf16, #tpu.memory_space<vmem>>, vector<16x128xbf16>
    %c0_4 = arith.constant 0 : index
    %c0_5 = arith.constant 0 : index
    %5 = vector.load %arg4[%c0_4, %c0_5] : memref<128x128xbf16, #tpu.memory_space<vmem>>, vector<128x128xbf16>
    %cst = arith.constant dense<0.000000e+00> : vector<16x128xf32>
    %6 = tpu.matmul %4, %5, %cst {dimension_numbers = #tpu.dot_dimension_numbers<[1], [0], [0], [1], [0, 0, 1, 1], [], []>} : vector<16x128xbf16>, vector<128x128xbf16>, vector<16x128xf32> -> vector<16x128xf32>
    %7 = arith.addf %3, %6 : vector<16x128xf32>
    %c0_6 = arith.constant 0 : index
    %c0_7 = arith.constant 0 : index
    %8 = vector.load %arg7[%c0_6, %c0_7] : memref<16x128xf32, #tpu.memory_space<vmem>>, vector<16x128xf32>
    tpu.vector_store %arg7[%c0_6, %c0_7], %7 {strides = array<i32>} : memref<16x128xf32, #tpu.memory_space<vmem>>, vector<16x128xf32>,
    %c0_i32_8 = arith.constant 0 : i32
    %9 = arith.cmpi eq, %arg2, %c0_i32_8 : i32
    %10 = arith.extui %9 : i1 to i32
    %c0_i32_9 = arith.constant 0 : i32
    %11 = arith.cmpi ne, %10, %c0_i32_9 : i32
    scf.if %11 {
      %c0_10 = arith.constant 0 : index
      %c0_11 = arith.constant 0 : index
      %12 = vector.load %arg7[%c0_10, %c0_11] : memref<16x128xf32, #tpu.memory_space<vmem>>, vector<16x128xf32>
      %c0_12 = arith.constant 0 : index
      %c0_13 = arith.constant 0 : index
      %13 = vector.load %arg5[%c0_12, %c0_13] : memref<1x128xf32, #tpu.memory_space<vmem>>, vector<1x128xf32>
      %14 = vector.broadcast %13 : vector<1x128xf32> to vector<16x128xf32>
      %15 = arith.addf %12, %14 : vector<16x128xf32>
      %c0_14 = arith.constant 0 : index
      %c0_15 = arith.constant 0 : index
      %16 = vector.load %arg6[%c0_14, %c0_15] : memref<16x128xf32, #tpu.memory_space<vmem>>, vector<16x128xf32>
      tpu.vector_store %arg6[%c0_14, %c0_15], %15 {strides = array<i32>} : memref<16x128xf32, #tpu.memory_space<vmem>>, vector<16x128xf32>,
    } else {
    }
    return
  }
  func.func @transform_0(%arg0: i32, %arg1: i32, %arg2: i32) -> (i32, i32) {
    %c0_i32 = arith.constant 0 : i32
    return %arg0, %arg2 : i32, i32
  }
  func.func @transform_1(%arg0: i32, %arg1: i32, %arg2: i32) -> (i32, i32) {
    %c0_i32 = arith.constant 0 : i32
    return %arg2, %arg1 : i32, i32
  }
  func.func @transform_2(%arg0: i32, %arg1: i32, %arg2: i32) -> (i32, i32) {
    %c0_i32 = arith.constant 0 : i32
    %c0_i32_0 = arith.constant 0 : i32
    return %c0_i32, %arg1 : i32, i32
  }
  func.func @transform_3(%arg0: i32, %arg1: i32, %arg2: i32) -> (i32, i32) {
    %c0_i32 = arith.constant 0 : i32
    return %arg0, %arg1 : i32, i32
  }
}

</mosaic_0001>

<llo_original>
// kernel: gpt_forward.18
$region0: #{gpt_forward.18}
  #allocation0 [shape = 'u32[]', space=smem, size = 0x4, offset = 0x4, fixed_abs, tag = 'smem constant byte address 0x4 - core index']
  #allocation1 [shape = 'u32[144,128]{1,0:T(1,128)}', space=vmem, size = 0x12000, scoped, tag = 'internal scratch']
  %s0 = inlined_call_operand.vmem [shape: f32[16,32], index: 0, kind: input, shape index: {}]
  %s1 = inlined_call_operand.vmem [shape: f32[16,32], index: 1, kind: input, shape index: {}]
  %s2 = inlined_call_operand.vmem [shape: f32[1,32], index: 2, kind: input, shape index: {}]
  %s3 = inlined_call_operand.vmem [shape: f32[1,32], index: 3, kind: input, shape index: {}]
  %s4 = inlined_call_operand.vmem [shape: f32[16,32], index: 4, kind: output, shape index: {}]
  %s5 = sld [smem:[#allocation0]]
  $region26: #{gpt_forward.18} parent=0
    _
  %s7 = ssub.s32 1, %s5
  %s8 = scalar_select 0, %s7, %s5
  // Predicated region
  $region2: #{gpt_forward.18} parent=0 // pred_check
    _
  $region3: #{gpt_forward.18} parent=0 // pred_check_branch
    %10 = sbr.rel (0) target = $region5
  $region4: #{gpt_forward.18} parent=0 // pred_region
    _
  $region5: #{gpt_forward.18} parent=0 // pred_fallthru
    _
  // Predicated region
  $region6: #{gpt_forward.18} parent=0 // pred_check
    _
  $region7: #{gpt_forward.18} parent=0 // pred_check_branch
    %12 = sbr.rel (0) target = $region9
  $region8: #{gpt_forward.18} parent=0 // pred_region
    _
  $region9: #{gpt_forward.18} parent=0 // pred_fallthru
    _
  // Predicated region
  $region10: #{gpt_forward.18} parent=0 // pred_check
    _
  $region11: #{gpt_forward.18} parent=0 // pred_check_branch
    %14 = sbr.rel (0) target = $region13
  $region12: #{gpt_forward.18} parent=0 // pred_region
    _
  $region13: #{gpt_forward.18} parent=0 // pred_fallthru
    _
  // Predicated region
  $region14: #{gpt_forward.18} parent=0 // pred_check
    _
  $region15: #{gpt_forward.18} parent=0 // pred_check_branch
    %16 = sbr.rel (0) target = $region17
  $region16: #{gpt_forward.18} parent=0 // pred_region
    _
  $region17: #{gpt_forward.18} parent=0 // pred_fallthru
    _
  %v17 = vld [vmem:[%s0] sm:$0xff]
  %v18 = vld [vmem:[%s0 + $0x8] sm:$0xff]
  %v19 = vld [vmem:[%s1] sm:$0xff]
  %v20 = vld [vmem:[%s1 + $0x8] sm:$0xff]
  %v21 = vadd.f32 %v17, %v19
  %v22 = vadd.f32 %v18, %v20
  %vm23 = vcmask 261120
  %v24 = vsel %vm23, %v21, 0.0
  %25 = vadd.xlane.f32.xlu0 %v24
  %v26 = vpop.xlane.xlu0 %25
  %v27 = vsel %vm23, %v22, 0.0
  %28 = vadd.xlane.f32.xlu0 %v27
  %v29 = vpop.xlane.xlu0 %28
  %v30 = vrcp.pop 32.0
  %v31 = vmul.f32 %v26, %v30
  %v32 = vmul.f32 %v29, %v30
  %v33 = vsub.f32 %v21, %v31
  %v34 = vsub.f32 %v22, %v32
  %v35 = vmul.f32 %v33, %v33
  %v36 = vmul.f32 %v34, %v34
  %v37 = vsel %vm23, %v35, 0.0
  %38 = vadd.xlane.f32.xlu0 %v37
  %v39 = vpop.xlane.xlu0 %38
  %v40 = vsel %vm23, %v36, 0.0
  %41 = vadd.xlane.f32.xlu0 %v40
  %v42 = vpop.xlane.xlu0 %41
  %v43 = vmul.f32 %v39, %v30
  %v44 = vmul.f32 %v42, %v30
  %v45 = vadd.f32 %v43, 1e-05
  %v46 = vadd.f32 %v44, 1e-05
  %v47 = vrsqrt.pop %v45
  %v48 = vrsqrt.pop %v46
  %v49 = vmul.f32 %v33, %v47
  %v50 = vmul.f32 %v34, %v48
  %v51 = vld [vmem:[%s2] sm:$0x1]
  %v53 = vlaneseq
  %v54 = vshrl.u32 %v53, 7
  %v55 = vsub.s32 0, %v54
  %v56 = vrot.slane %v51, %v55
  %v58 = vmul.f32 %v49, %v56
  %v59 = vmul.f32 %v50, %v56
  %v60 = vld [vmem:[%s3] sm:$0x1]
  %v62 = vlaneseq
  %v63 = vshrl.u32 %v62, 7
  %v64 = vsub.s32 0, %v63
  %v65 = vrot.slane %v60, %v64
  %v67 = vadd.f32 %v58, %v65
  %v68 = vadd.f32 %v59, %v65
  %69 = vst.msk [vmem:[%s4] sm:$0xff] %vm23, %v67
  %70 = vst.msk [vmem:[%s4 + $0x8] sm:$0xff] %vm23, %v68
  // Predicated region
  $region18: #{gpt_forward.18} parent=0 // pred_check
    _
  $region19: #{gpt_forward.18} parent=0 // pred_check_branch
    %72 = sbr.rel (0) target = $region21
  $region20: #{gpt_forward.18} parent=0 // pred_region
    _
  $region21: #{gpt_forward.18} parent=0 // pred_fallthru
    _
  // Predicated region
  $region22: #{gpt_forward.18} parent=0 // pred_check
    _
  $region23: #{gpt_forward.18} parent=0 // pred_check_branch
    %74 = sbr.rel (0) target = $region25
  $region24: #{gpt_forward.18} parent=0 // pred_region
    _
  $region25: #{gpt_forward.18} parent=0 // pred_fallthru
    _

// kernel: gpt_forward.15
$region0: #{gpt_forward.15}
  #allocation0 [shape = 'u32[]', space=smem, size = 0x4, offset = 0x4, fixed_abs, tag = 'smem constant byte address 0x4 - core index']
  #allocation1 [shape = 'u32[144,128]{1,0:T(1,128)}', space=vmem, size = 0x12000, scoped, tag = 'internal scratch']
  #allocation2 [shape = 'f32[16,128]{1,0:T(8,128)}', space=vmem, size = 0x2000, scoped, tag = 'scratch operand']
  %s0 = inlined_call_operand.vmem [shape: bf16[16,32], index: 0, kind: input, shape index: {}]
  %s1 = inlined_call_operand.vmem [shape: bf16[32,128], index: 1, kind: input, shape index: {}]
  %s2 = inlined_call_operand.vmem [shape: f32[1,128], index: 2, kind: input, shape index: {}]
  %s3 = inlined_call_operand.vmem [shape: f32[16,128], index: 3, kind: output, shape index: {}]
  %s4 = sld [smem:[#allocation0]]
  $region30: #{gpt_forward.15} parent=0
    _
  %s6 = ssub.s32 1, %s4
  %s7 = scalar_select 0, %s6, %s4
  // Predicated region
  $region2: #{gpt_forward.15} parent=0 // pred_check
    _
  $region3: #{gpt_forward.15} parent=0 // pred_check_branch
    %9 = sbr.rel (0) target = $region5
  $region4: #{gpt_forward.15} parent=0 // pred_region
    _
  $region5: #{gpt_forward.15} parent=0 // pred_fallthru
    _
  // Predicated region
  $region6: #{gpt_forward.15} parent=0 // pred_check
    _
  $region7: #{gpt_forward.15} parent=0 // pred_check_branch
    %11 = sbr.rel (0) target = $region9
  $region8: #{gpt_forward.15} parent=0 // pred_region
    _
  $region9: #{gpt_forward.15} parent=0 // pred_fallthru
    _
  // Predicated region
  $region10: #{gpt_forward.15} parent=0 // pred_check
    _
  $region11: #{gpt_forward.15} parent=0 // pred_check_branch
    %13 = sbr.rel (0) target = $region13
  $region12: #{gpt_forward.15} parent=0 // pred_region
    _
  $region13: #{gpt_forward.15} parent=0 // pred_fallthru
    _
  %p15 = scmp.eq.s32.totalorder 0, 0
  // Predicated region
  $region14: #{gpt_forward.15} parent=0 // pred_check
    %p16 = pneg %p15
  $region15: #{gpt_forward.15} parent=0 // pred_check_branch
    %18 = sbr.rel (%p16) target = $region17
  $region16: #{gpt_forward.15} parent=0 // pred_region
    %19 = vst [vmem:[#allocation2] sm:$0xff] 0.0
    %20 = vst [vmem:[#allocation2 + $0x8] sm:$0xff] 0.0
  $region17: #{gpt_forward.15} parent=0 // pred_fallthru
    _
  %v21 = vld [vmem:[#allocation2] sm:$0xff]
  %v22 = vld [vmem:[#allocation2 + $0x8] sm:$0xff]
  %v23 = vld [vmem:[%s0] sm:$0xf]
  %v24 = vld [vmem:[%s0 + $0x4] sm:$0xf]
  %v25 = vld [vmem:[%s1] sm:$0xf]
  %v26 = vld [vmem:[%s1 + $0x4] sm:$0xf]
  %v27 = vld [vmem:[%s1 + $0x8] sm:$0xf]
  %v28 = vld [vmem:[%s1 + $0xc] sm:$0xf]
  %v31 = vunpack.c.l.b16 %v23
  %v32 = vunpack.c.l.b16 %v24
  %v33 = vpack.c.b16 %v32, %v31
  %v38 = vunpack.c.l.b16 %v25
  %v39 = vunpack.c.l.b16 %v26
  %v40 = vunpack.c.l.b16 %v27
  %v41 = vunpack.c.l.b16 %v28
  %v42 = vpack.c.b16 %v39, %v38
  %v43 = vpack.c.b16 %v41, %v40
  %vm46 = vcmask 261120
  %v48 = vsel %vm46, %v33, 0
  %50 = vmatprep.subr.bf16.mxu0 0
  %51 = vmatpush1.bf16.msra.mxu0 0
  %52 = vmatprep.subr.bf16.mxu0 0
  %53 = vmatpush1.bf16.msra.mxu0 0
  %54 = vmatprep.subr.bf16.mxu0 0
  %55 = vmatpush1.bf16.msra.mxu0 0
  %56 = vmatprep.subr.bf16.mxu0 0
  %57 = vmatpush1.bf16.msra.mxu0 0
  %58 = vmatprep.subr.bf16.mxu0 0
  %59 = vmatpush1.bf16.msra.mxu0 0
  %60 = vmatprep.subr.bf16.mxu0 0
  %61 = vmatpush1.bf16.msra.mxu0 0
  %62 = vmatprep.subr.bf16.mxu0 0
  %63 = vmatpush1.bf16.msra.mxu0 %v43
  %64 = vmatprep.subr.bf16.mxu0 0
  %65 = vmatpush1.bf16.msra.mxu0 %v42
  %66 = vmatprep.subr.bf16.mxu0 0
  %67 = vmatpush2.bf16.msra.mxu0 0
  %68 = vmatprep.subr.bf16.mxu0 0
  %69 = vmatpush2.bf16.msra.mxu0 0
  %70 = vmatprep.subr.bf16.mxu0 0
  %71 = vmatpush2.bf16.msra.mxu0 0
  %72 = vmatprep.subr.bf16.mxu0 0
  %73 = vmatpush2.bf16.msra.mxu0 0
  %74 = vmatprep.subr.bf16.mxu0 0
  %75 = vmatpush2.bf16.msra.mxu0 0
  %76 = vmatprep.subr.bf16.mxu0 0
  %77 = vmatpush2.bf16.msra.mxu0 0
  %78 = vmatprep.subr.bf16.mxu0 0
  %79 = vmatpush2.bf16.msra.mxu0 0
  %80 = vmatprep.subr.bf16.mxu0 0
  %81 = vmatpush2.bf16.msra.mxu0 0
  %82 = vmatprep.mubr.bf16.mxu0 0
  %83 = vmatmul.mubr.bf16.gmra.mxu0 %v48
  %v84 = vpop.f32.mrf.mxu0
  %v85 = vadd.f32 0.0, %v84
  %v86 = vpop.f32.mrf.mxu0
  %v87 = vpop.f32.mrf.mxu0
  %v88 = vadd.f32 0.0, %v87
  %v89 = vpop.f32.mrf.mxu0
  %90 = vdwg.mxu0
  %v91 = vadd.f32 %v21, %v85
  %v92 = vadd.f32 %v22, %v88
  %93 = vst [vmem:[#allocation2] sm:$0xff] %v91
  %94 = vst [vmem:[#allocation2 + $0x8] sm:$0xff] %v92
  // Predicated region
  $region18: #{gpt_forward.15} parent=0 // pred_check
    %p95 = pneg %p15
  $region19: #{gpt_forward.15} parent=0 // pred_check_branch
    %97 = sbr.rel (%p95) target = $region21
  $region20: #{gpt_forward.15} parent=0 // pred_region
    %v98 = vld [vmem:[#allocation2] sm:$0xff]
    %v99 = vld [vmem:[#allocation2 + $0x8] sm:$0xff]
    %v100 = vld [vmem:[%s2] sm:$0x1]
    %v102 = vlaneseq
    %v103 = vshrl.u32 %v102, 7
    %v104 = vsub.s32 0, %v103
    %v105 = vrot.slane %v100, %v104
    %v107 = vadd.f32 %v98, %v105
    %v108 = vadd.f32 %v99, %v105
    %109 = vst [vmem:[%s3] sm:$0xff] %v107
    %110 = vst [vmem:[%s3 + $0x8] sm:$0xff] %v108
  $region21: #{gpt_forward.15} parent=0 // pred_fallthru
    _
  // Predicated region
  $region22: #{gpt_forward.15} parent=0 // pred_check
    _
  $region23: #{gpt_forward.15} parent=0 // pred_check_branch
    %112 = sbr.rel (0) target = $region25
  $region24: #{gpt_forward.15} parent=0 // pred_region
    _
  $region25: #{gpt_forward.15} parent=0 // pred_fallthru
    _
  // Predicated region
  $region26: #{gpt_forward.15} parent=0 // pred_check
    _
  $region27: #{gpt_forward.15} parent=0 // pred_check_branch
    %114 = sbr.rel (0) target = $region29
  $region28: #{gpt_forward.15} parent=0 // pred_region
    _
  $region29: #{gpt_forward.15} parent=0 // pred_fallthru
    _

// kernel: gpt_forward.19
$region0: #{gpt_forward.19}
  #allocation0 [shape = 'u32[]', space=smem, size = 0x4, offset = 0x4, fixed_abs, tag = 'smem constant byte address 0x4 - core index']
  #allocation1 [shape = 'u32[144,128]{1,0:T(1,128)}', space=vmem, size = 0x12000, scoped, tag = 'internal scratch']
  #allocation2 [shape = 'f32[16,128]{1,0:T(8,128)}', space=vmem, size = 0x2000, scoped, tag = 'scratch operand']
  %s0 = inlined_call_operand.vmem [shape: bf16[16,32], index: 0, kind: input, shape index: {}]
  %s1 = inlined_call_operand.vmem [shape: bf16[32,128], index: 1, kind: input, shape index: {}]
  %s2 = inlined_call_operand.vmem [shape: f32[1,128], index: 2, kind: input, shape index: {}]
  %s3 = inlined_call_operand.vmem [shape: f32[16,128], index: 3, kind: output, shape index: {}]
  %s4 = sld [smem:[#allocation0]]
  $region30: #{gpt_forward.19} parent=0
    _
  %s6 = ssub.s32 1, %s4
  %s7 = scalar_select 0, %s6, %s4
  // Predicated region
  $region2: #{gpt_forward.19} parent=0 // pred_check
    _
  $region3: #{gpt_forward.19} parent=0 // pred_check_branch
    %9 = sbr.rel (0) target = $region5
  $region4: #{gpt_forward.19} parent=0 // pred_region
    _
  $region5: #{gpt_forward.19} parent=0 // pred_fallthru
    _
  // Predicated region
  $region6: #{gpt_forward.19} parent=0 // pred_check
    _
  $region7: #{gpt_forward.19} parent=0 // pred_check_branch
    %11 = sbr.rel (0) target = $region9
  $region8: #{gpt_forward.19} parent=0 // pred_region
    _
  $region9: #{gpt_forward.19} parent=0 // pred_fallthru
    _
  // Predicated region
  $region10: #{gpt_forward.19} parent=0 // pred_check
    _
  $region11: #{gpt_forward.19} parent=0 // pred_check_branch
    %13 = sbr.rel (0) target = $region13
  $region12: #{gpt_forward.19} parent=0 // pred_region
    _
  $region13: #{gpt_forward.19} parent=0 // pred_fallthru
    _
  %p15 = scmp.eq.s32.totalorder 0, 0
  // Predicated region
  $region14: #{gpt_forward.19} parent=0 // pred_check
    %p16 = pneg %p15
  $region15: #{gpt_forward.19} parent=0 // pred_check_branch
    %18 = sbr.rel (%p16) target = $region17
  $region16: #{gpt_forward.19} parent=0 // pred_region
    %19 = vst [vmem:[#allocation2] sm:$0xff] 0.0
    %20 = vst [vmem:[#allocation2 + $0x8] sm:$0xff] 0.0
  $region17: #{gpt_forward.19} parent=0 // pred_fallthru
    _
  %v21 = vld [vmem:[#allocation2] sm:$0xff]
  %v22 = vld [vmem:[#allocation2 + $0x8] sm:$0xff]
  %v23 = vld [vmem:[%s0] sm:$0xf]
  %v24 = vld [vmem:[%s0 + $0x4] sm:$0xf]
  %v25 = vld [vmem:[%s1] sm:$0xf]
  %v26 = vld [vmem:[%s1 + $0x4] sm:$0xf]
  %v27 = vld [vmem:[%s1 + $0x8] sm:$0xf]
  %v28 = vld [vmem:[%s1 + $0xc] sm:$0xf]
  %v31 = vunpack.c.l.b16 %v23
  %v32 = vunpack.c.l.b16 %v24
  %v33 = vpack.c.b16 %v32, %v31
  %v38 = vunpack.c.l.b16 %v25
  %v39 = vunpack.c.l.b16 %v26
  %v40 = vunpack.c.l.b16 %v27
  %v41 = vunpack.c.l.b16 %v28
  %v42 = vpack.c.b16 %v39, %v38
  %v43 = vpack.c.b16 %v41, %v40
  %vm46 = vcmask 261120
  %v48 = vsel %vm46, %v33, 0
  %50 = vmatprep.subr.bf16.mxu0 0
  %51 = vmatpush1.bf16.msra.mxu0 0
  %52 = vmatprep.subr.bf16.mxu0 0
  %53 = vmatpush1.bf16.msra.mxu0 0
  %54 = vmatprep.subr.bf16.mxu0 0
  %55 = vmatpush1.bf16.msra.mxu0 0
  %56 = vmatprep.subr.bf16.mxu0 0
  %57 = vmatpush1.bf16.msra.mxu0 0
  %58 = vmatprep.subr.bf16.mxu0 0
  %59 = vmatpush1.bf16.msra.mxu0 0
  %60 = vmatprep.subr.bf16.mxu0 0
  %61 = vmatpush1.bf16.msra.mxu0 0
  %62 = vmatprep.subr.bf16.mxu0 0
  %63 = vmatpush1.bf16.msra.mxu0 %v43
  %64 = vmatprep.subr.bf16.mxu0 0
  %65 = vmatpush1.bf16.msra.mxu0 %v42
  %66 = vmatprep.subr.bf16.mxu0 0
  %67 = vmatpush2.bf16.msra.mxu0 0
  %68 = vmatprep.subr.bf16.mxu0 0
  %69 = vmatpush2.bf16.msra.mxu0 0
  %70 = vmatprep.subr.bf16.mxu0 0
  %71 = vmatpush2.bf16.msra.mxu0 0
  %72 = vmatprep.subr.bf16.mxu0 0
  %73 = vmatpush2.bf16.msra.mxu0 0
  %74 = vmatprep.subr.bf16.mxu0 0
  %75 = vmatpush2.bf16.msra.mxu0 0
  %76 = vmatprep.subr.bf16.mxu0 0
  %77 = vmatpush2.bf16.msra.mxu0 0
  %78 = vmatprep.subr.bf16.mxu0 0
  %79 = vmatpush2.bf16.msra.mxu0 0
  %80 = vmatprep.subr.bf16.mxu0 0
  %81 = vmatpush2.bf16.msra.mxu0 0
  %82 = vmatprep.mubr.bf16.mxu0 0
  %83 = vmatmul.mubr.bf16.gmra.mxu0 %v48
  %v84 = vpop.f32.mrf.mxu0
  %v85 = vadd.f32 0.0, %v84
  %v86 = vpop.f32.mrf.mxu0
  %v87 = vpop.f32.mrf.mxu0
  %v88 = vadd.f32 0.0, %v87
  %v89 = vpop.f32.mrf.mxu0
  %90 = vdwg.mxu0
  %v91 = vadd.f32 %v21, %v85
  %v92 = vadd.f32 %v22, %v88
  %93 = vst [vmem:[#allocation2] sm:$0xff] %v91
  %94 = vst [vmem:[#allocation2 + $0x8] sm:$0xff] %v92
  // Predicated region
  $region18: #{gpt_forward.19} parent=0 // pred_check
    %p95 = pneg %p15
  $region19: #{gpt_forward.19} parent=0 // pred_check_branch
    %97 = sbr.rel (%p95) target = $region21
  $region20: #{gpt_forward.19} parent=0 // pred_region
    %v98 = vld [vmem:[#allocation2] sm:$0xff]
    %v99 = vld [vmem:[#allocation2 + $0x8] sm:$0xff]
    %v100 = vld [vmem:[%s2] sm:$0x1]
    %v102 = vlaneseq
    %v103 = vshrl.u32 %v102, 7
    %v104 = vsub.s32 0, %v103
    %v105 = vrot.slane %v100, %v104
    %v107 = vadd.f32 %v98, %v105
    %v108 = vadd.f32 %v99, %v105
    %v109 = vmax.f32 %v107, 0.0
    %v110 = vmax.f32 %v108, 0.0
    %111 = vst [vmem:[%s3] sm:$0xff] %v109
    %112 = vst [vmem:[%s3 + $0x8] sm:$0xff] %v110
  $region21: #{gpt_forward.19} parent=0 // pred_fallthru
    _
  // Predicated region
  $region22: #{gpt_forward.19} parent=0 // pred_check
    _
  $region23: #{gpt_forward.19} parent=0 // pred_check_branch
    %114 = sbr.rel (0) target = $region25
  $region24: #{gpt_forward.19} parent=0 // pred_region
    _
  $region25: #{gpt_forward.19} parent=0 // pred_fallthru
    _
  // Predicated region
  $region26: #{gpt_forward.19} parent=0 // pred_check
    _
  $region27: #{gpt_forward.19} parent=0 // pred_check_branch
    %116 = sbr.rel (0) target = $region29
  $region28: #{gpt_forward.19} parent=0 // pred_region
    _
  $region29: #{gpt_forward.19} parent=0 // pred_fallthru
    _

// kernel: gpt_forward.16
$region0: #{gpt_forward.16}
  #allocation0 [shape = 'u32[]', space=smem, size = 0x4, offset = 0x4, fixed_abs, tag = 'smem constant byte address 0x4 - core index']
  #allocation1 [shape = 'u32[144,128]{1,0:T(1,128)}', space=vmem, size = 0x12000, scoped, tag = 'internal scratch']
  %s0 = inlined_call_operand.vmem [shape: f32[2,8,96], index: 0, kind: input, shape index: {}]
  %s1 = inlined_call_operand.vmem [shape: f32[2,8,32], index: 1, kind: output, shape index: {}]
  %s2 = sld [smem:[#allocation0]]
  $region37: #{gpt_forward.16} parent=0
    _
  %s4 = ssub.s32 1, %s2
  %s5 = scalar_select 0, %s4, %s2
  loop: start=0, step=1, limit=4
  $region2: #{gpt_forward.16} parent=0 // loop_pre_header
    _
  $region3: #{gpt_forward.16} parent=0 // loop_header
    %s7 = sphi 0, %s11
    %p8 = scmp.ge.s32.totalorder %s7, 4
    %s17 = sphi 0, %s19
    %s20 = sphi 0, %s17
    %s21 = sphi 0, %s20
    %s37 = sphi 0, %s21
    %s43 = sphi 0, %s45
    %s46 = sphi 0, %s43
    %s47 = sphi 0, %s46
    %s63 = sphi 0, %s47
  $region4: #{gpt_forward.16} parent=0 // loop_header_branch
    %10 = sbr.rel (%p8) target = $region8
  $region5: #{gpt_forward.16} parent=0 // loop_body
    %s12 = ssub.s32 %s7, 1
    %s13 = ssub.s32 %s7, 2
    %s14 = sadd.s32 %s7, 1
    %s15 = ssub.s32 %s7, %s14
    %p16 = scmp.eq.s32.totalorder %s15, 0
    %s18 = sadd.s32 %s17, 1
    %s19 = scalar_select %p16, %s17, %s18
    %p22 = pneg %p16
    %p23 = scmp.eq.s32.totalorder %s7, 1
    %p24 = por %p22, %p23
    %p25 = scmp.ne.s32.totalorder %s17, %s20
    %p26 = scmp.eq.s32.totalorder %s7, 0
    %p27 = por %p25, %p26
    %p28 = scmp.ne.s32.totalorder %s17, %s20
    %p29 = scmp.eq.s32.totalorder %s12, 1
    %p30 = por %p28, %p29
    %p31 = scmp.ne.s32.totalorder %s20, %s21
    %p32 = scmp.eq.s32.totalorder %s12, 0
    %p33 = por %p31, %p32
    %p34 = scmp.ne.s32.totalorder %s20, %s21
    %p35 = scmp.eq.s32.totalorder %s13, 1
    %p36 = por %p34, %p35
    %p38 = scmp.ne.s32.totalorder %s21, %s37
    %p39 = scmp.eq.s32.totalorder %s13, 0
    %p40 = por %p38, %p39
    %s41 = ssub.s32 %s7, %s14
    %p42 = scmp.eq.s32.totalorder %s41, 0
    %s44 = sadd.s32 %s43, 1
    %s45 = scalar_select %p42, %s43, %s44
    %p48 = pneg %p42
    %p49 = scmp.eq.s32.totalorder %s7, 1
    %p50 = por %p48, %p49
    %p51 = scmp.ne.s32.totalorder %s43, %s46
    %p52 = scmp.eq.s32.totalorder %s7, 0
    %p53 = por %p51, %p52
    %p54 = scmp.ne.s32.totalorder %s43, %s46
    %p55 = scmp.eq.s32.totalorder %s12, 1
    %p56 = por %p54, %p55
    %p57 = scmp.ne.s32.totalorder %s46, %s47
    %p58 = scmp.eq.s32.totalorder %s12, 0
    %p59 = por %p57, %p58
    %p60 = scmp.ne.s32.totalorder %s46, %s47
    %p61 = scmp.eq.s32.totalorder %s13, 1
    %p62 = por %p60, %p61
    %p64 = scmp.ne.s32.totalorder %s47, %s63
    %p65 = scmp.eq.s32.totalorder %s13, 0
    %p66 = por %p64, %p65
    %p67 = scmp.le.s32.totalorder 1, %s7
    %p68 = scmp.lt.s32.totalorder %s7, 3
    %p69 = pnand %p67, %p68
    %p70 = pneg %p69
    // Predicated region
    $region9: #{gpt_forward.16} parent=5 // pred_check
      _
    $region10: #{gpt_forward.16} parent=5 // pred_check_branch
      %72 = sbr.rel (%p69) target = $region12
    $region11: #{gpt_forward.16} parent=5 // pred_region
      %s73 = ssub.s32 %s7, 1
    $region12: #{gpt_forward.16} parent=5 // pred_fallthru
      _
    %p74 = scmp.lt.s32.totalorder %s7, 2
    // Predicated region
    $region13: #{gpt_forward.16} parent=5 // pred_check
      %p75 = pneg %p74
    $region14: #{gpt_forward.16} parent=5 // pred_check_branch
      %77 = sbr.rel (%p75) target = $region16
    $region15: #{gpt_forward.16} parent=5 // pred_region
      // Predicated region
      $region17: #{gpt_forward.16} parent=15 // pred_check
        %p78 = pneg %p27
      $region18: #{gpt_forward.16} parent=15 // pred_check_branch
        %80 = sbr.rel (%p78) target = $region20
      $region19: #{gpt_forward.16} parent=15 // pred_region
        %p81 = scmp.lt.s32.totalorder %s7, 1
        %s82 = scalar_select %p81, %s7, 1
        %s83 = smul.addr %s82, 8
        %s84 = scalar_lea.vmem %s0, %s83
      $region20: #{gpt_forward.16} parent=15 // pred_fallthru
        _
    $region16: #{gpt_forward.16} parent=5 // pred_fallthru
      _
    %p85 = scmp.le.s32.totalorder 1, %s7
    %p86 = scmp.lt.s32.totalorder %s7, 3
    %p87 = pnand %p85, %p86
    %p88 = pneg %p87
    // Predicated region
    $region21: #{gpt_forward.16} parent=5 // pred_check
      _
    $region22: #{gpt_forward.16} parent=5 // pred_check_branch
      %90 = sbr.rel (%p87) target = $region24
    $region23: #{gpt_forward.16} parent=5 // pred_region
      %s91 = ssub.s32 %s7, 1
      %p92 = scmp.lt.s32.totalorder %s12, 1
      %s93 = scalar_select %p92, %s12, 1
      %s94 = smul.addr %s93, 8
      %s95 = scalar_lea.vmem %s0, %s94
      %p96 = pneg %p33
      %p97 = pneg %p30
      %p98 = pneg %p59
      %p99 = pneg %p56
      %p100 = scmp.lt.s32.totalorder %s12, 1
      %s101 = scalar_select %p100, %s12, 1
      %s102 = smul.addr %s101, 8
      %s103 = scalar_lea.vmem %s1, %s102
      %p104 = scmp.lt.s32.totalorder %s12, 1
      %s105 = scalar_select %p104, %s12, 1
      %s106 = smul.addr %s105, 8
      %s107 = scalar_lea.vmem %s0, %s106
      %p108 = scmp.lt.s32.totalorder %s12, 1
      %s109 = scalar_select %p108, %s12, 1
      %s110 = smul.addr %s109, 8
      %s111 = scalar_lea.vmem %s1, %s110
      %v113 = vlaneseq
      %v114 = vshrl.u32 %v113, 7
      %v115 = vlaneseq
      %v116 = vand.u32 %v115, 127
      %vm117 = vcmp.le.s32.totalorder %v116, %v114
      %v118 = vsel %vm117, 0.0, -1e+30
      %v119 = vld [vmem:[%s107] sm:$0xff]
      %v120 = vpack.c.bf16 %v119, %v119
      %122 = vrot.lane.b32.xlu0 %v120, 96
      %v123 = vpop.permute.xlu0 %122
      %vm124 = vcmask 64512
      %v126 = vsel %vm124, %v120, 0
      %v129 = vsel %vm124, %v123, 0
      %131 = vmatprep.subr.bf16.mxu0 0
      %132 = vmatpush1.bf16.xpose.msra.mxu0 0
      %133 = vmatprep.subr.bf16.mxu0 0
      %134 = vmatpush1.bf16.xpose.msra.mxu0 0
      %135 = vmatprep.subr.bf16.mxu0 0
      %136 = vmatpush1.bf16.xpose.msra.mxu0 0
      %137 = vmatprep.subr.bf16.mxu0 0
      %138 = vmatpush1.bf16.xpose.msra.mxu0 0
      %139 = vmatprep.subr.bf16.mxu0 0
      %140 = vmatpush1.bf16.xpose.msra.mxu0 0
      %141 = vmatprep.subr.bf16.mxu0 0
      %142 = vmatpush1.bf16.xpose.msra.mxu0 0
      %143 = vmatprep.subr.bf16.mxu0 0
      %144 = vmatpush1.bf16.xpose.msra.mxu0 0
      %145 = vmatprep.subr.bf16.mxu0 0
      %146 = vmatpush1.bf16.xpose.msra.mxu0 %v129
      %147 = vmatprep.subr.bf16.mxu0 0
      %148 = vmatpush2.bf16.xpose.msra.mxu0 0
      %149 = vmatprep.subr.bf16.mxu0 0
      %150 = vmatpush2.bf16.xpose.msra.mxu0 0
      %151 = vmatprep.subr.bf16.mxu0 0
      %152 = vmatpush2.bf16.xpose.msra.mxu0 0
      %153 = vmatprep.subr.bf16.mxu0 0
      %154 = vmatpush2.bf16.xpose.msra.mxu0 0
      %155 = vmatprep.subr.bf16.mxu0 0
      %156 = vmatpush2.bf16.xpose.msra.mxu0 0
      %157 = vmatprep.subr.bf16.mxu0 0
      %158 = vmatpush2.bf16.xpose.msra.mxu0 0
      %159 = vmatprep.subr.bf16.mxu0 0
      %160 = vmatpush2.bf16.xpose.msra.mxu0 0
      %161 = vmatprep.subr.bf16.mxu0 0
      %162 = vmatpush2.bf16.xpose.msra.mxu0 0
      %163 = vmatprep.mubr.bf16.mxu0 0
      %164 = vmatmul.mubr.bf16.gmra.mxu0 %v126
      %v165 = vpop.f32.mrf.mxu0
      %v166 = vadd.f32 0.0, %v165
      %v167 = vpop.f32.mrf.mxu0
      %v168 = vpop.f32.mrf.mxu0
      %v169 = vpop.f32.mrf.mxu0
      %170 = vdwg.mxu0
      %v171 = vmul.f32 %v166, 0.35355338
      %v172 = vadd.f32 %v171, %v118
      %v173 = vsel %vm124, %v172, -inf
      %174 = vmax.xlane.f32.xlu0 %v173
      %v175 = vpop.xlane.xlu0 %174
      %v176 = vsub.f32 %v172, %v175
      %v177 = vmul.f32 %v176, 1.442695
      %v178 = vpow.pop %v177
      %v179 = vsel %vm124, %v178, 0.0
      %180 = vadd.xlane.f32.xlu0 %v179
      %v181 = vpop.xlane.xlu0 %180
      %v182 = vrcp.pop %v181
      %v183 = vmul.f32 %v178, %v182
      %v184 = vpack.c.bf16 %v183, %v183
      %185 = vrot.lane.b32.xlu0 %v120, 64
      %v186 = vpop.permute.xlu0 %185
      %v188 = vsel %vm124, %v184, 0
      %vm190 = vcmask 1043456
      %v192 = vsel %vm190, %v186, 0
      %194 = vmatprep.subr.bf16.mxu0 0
      %195 = vmatpush1.bf16.msra.mxu0 0
      %196 = vmatprep.subr.bf16.mxu0 0
      %197 = vmatpush1.bf16.msra.mxu0 0
      %198 = vmatprep.subr.bf16.mxu0 0
      %199 = vmatpush1.bf16.msra.mxu0 0
      %200 = vmatprep.subr.bf16.mxu0 0
      %201 = vmatpush1.bf16.msra.mxu0 0
      %202 = vmatprep.subr.bf16.mxu0 0
      %203 = vmatpush1.bf16.msra.mxu0 0
      %204 = vmatprep.subr.bf16.mxu0 0
      %205 = vmatpush1.bf16.msra.mxu0 0
      %206 = vmatprep.subr.bf16.mxu0 0
      %207 = vmatpush1.bf16.msra.mxu0 0
      %208 = vmatprep.subr.bf16.mxu0 0
      %209 = vmatpush1.bf16.msra.mxu0 %v192
      %210 = vmatprep.subr.bf16.mxu0 0
      %211 = vmatpush2.bf16.msra.mxu0 0
      %212 = vmatprep.subr.bf16.mxu0 0
      %213 = vmatpush2.bf16.msra.mxu0 0
      %214 = vmatprep.subr.bf16.mxu0 0
      %215 = vmatpush2.bf16.msra.mxu0 0
      %216 = vmatprep.subr.bf16.mxu0 0
      %217 = vmatpush2.bf16.msra.mxu0 0
      %218 = vmatprep.subr.bf16.mxu0 0
      %219 = vmatpush2.bf16.msra.mxu0 0
      %220 = vmatprep.subr.bf16.mxu0 0
      %221 = vmatpush2.bf16.msra.mxu0 0
      %222 = vmatprep.subr.bf16.mxu0 0
      %223 = vmatpush2.bf16.msra.mxu0 0
      %224 = vmatprep.subr.bf16.mxu0 0
      %225 = vmatpush2.bf16.msra.mxu0 0
      %226 = vmatprep.mubr.bf16.mxu0 0
      %227 = vmatmul.mubr.bf16.gmra.mxu0 %v188
      %v228 = vpop.f32.mrf.mxu0
      %v229 = vadd.f32 0.0, %v228
      %v230 = vpop.f32.mrf.mxu0
      %v231 = vpop.f32.mrf.mxu0
      %v232 = vpop.f32.mrf.mxu0
      %233 = vdwg.mxu0
      %234 = vst.msk [vmem:[%s111] sm:$0xff] %vm124, %v229
      %v235 = vld [vmem:[%s107] sm:$0xff]
      %v236 = vpack.c.bf16 %v235, %v235
      %238 = vrot.lane.b32.xlu0 %v236, 120
      %v239 = vpop.permute.xlu0 %238
      %240 = vrot.lane.b32.xlu0 %v236, 88
      %v241 = vpop.permute.xlu0 %240
      %v243 = vsel %vm124, %v239, 0
      %v246 = vsel %vm124, %v241, 0
      %248 = vmatprep.subr.bf16.mxu0 0
      %249 = vmatpush1.bf16.xpose.msra.mxu0 0
      %250 = vmatprep.subr.bf16.mxu0 0
      %251 = vmatpush1.bf16.xpose.msra.mxu0 0
      %252 = vmatprep.subr.bf16.mxu0 0
      %253 = vmatpush1.bf16.xpose.msra.mxu0 0
      %254 = vmatprep.subr.bf16.mxu0 0
      %255 = vmatpush1.bf16.xpose.msra.mxu0 0
      %256 = vmatprep.subr.bf16.mxu0 0
      %257 = vmatpush1.bf16.xpose.msra.mxu0 0
      %258 = vmatprep.subr.bf16.mxu0 0
      %259 = vmatpush1.bf16.xpose.msra.mxu0 0
      %260 = vmatprep.subr.bf16.mxu0 0
      %261 = vmatpush1.bf16.xpose.msra.mxu0 0
      %262 = vmatprep.subr.bf16.mxu0 0
      %263 = vmatpush1.bf16.xpose.msra.mxu0 %v246
      %264 = vmatprep.subr.bf16.mxu0 0
      %265 = vmatpush2.bf16.xpose.msra.mxu0 0
      %266 = vmatprep.subr.bf16.mxu0 0
      %267 = vmatpush2.bf16.xpose.msra.mxu0 0
      %268 = vmatprep.subr.bf16.mxu0 0
      %269 = vmatpush2.bf16.xpose.msra.mxu0 0
      %270 = vmatprep.subr.bf16.mxu0 0
      %271 = vmatpush2.bf16.xpose.msra.mxu0 0
      %272 = vmatprep.subr.bf16.mxu0 0
      %273 = vmatpush2.bf16.xpose.msra.mxu0 0
      %274 = vmatprep.subr.bf16.mxu0 0
      %275 = vmatpush2.bf16.xpose.msra.mxu0 0
      %276 = vmatprep.subr.bf16.mxu0 0
      %277 = vmatpush2.bf16.xpose.msra.mxu0 0
      %278 = vmatprep.subr.bf16.mxu0 0
      %279 = vmatpush2.bf16.xpose.msra.mxu0 0
      %280 = vmatprep.mubr.bf16.mxu0 0
      %281 = vmatmul.mubr.bf16.gmra.mxu0 %v243
      %v282 = vpop.f32.mrf.mxu0
      %v283 = vadd.f32 0.0, %v282
      %v284 = vpop.f32.mrf.mxu0
      %v285 = vpop.f32.mrf.mxu0
      %v286 = vpop.f32.mrf.mxu0
      %287 = vdwg.mxu0
      %v288 = vmul.f32 %v283, 0.35355338
      %v289 = vadd.f32 %v288, %v118
      %v290 = vsel %vm124, %v289, -inf
      %291 = vmax.xlane.f32.xlu0 %v290
      %v292 = vpop.xlane.xlu0 %291
      %v293 = vsub.f32 %v289, %v292
      %v294 = vmul.f32 %v293, 1.442695
      %v295 = vpow.pop %v294
      %v296 = vsel %vm124, %v295, 0.0
      %297 = vadd.xlane.f32.xlu0 %v296
      %v298 = vpop.xlane.xlu0 %297
      %v299 = vrcp.pop %v298
      %v300 = vmul.f32 %v295, %v299
      %v301 = vpack.c.bf16 %v300, %v300
      %302 = vrot.lane.b32.xlu0 %v236, 56
      %v303 = vpop.permute.xlu0 %302
      %v305 = vsel %vm124, %v301, 0
      %v308 = vsel %vm190, %v303, 0
      %310 = vmatprep.subr.bf16.mxu0 0
      %311 = vmatpush1.bf16.msra.mxu0 0
      %312 = vmatprep.subr.bf16.mxu0 0
      %313 = vmatpush1.bf16.msra.mxu0 0
      %314 = vmatprep.subr.bf16.mxu0 0
      %315 = vmatpush1.bf16.msra.mxu0 0
      %316 = vmatprep.subr.bf16.mxu0 0
      %317 = vmatpush1.bf16.msra.mxu0 0
      %318 = vmatprep.subr.bf16.mxu0 0
      %319 = vmatpush1.bf16.msra.mxu0 0
      %320 = vmatprep.subr.bf16.mxu0 0
      %321 = vmatpush1.bf16.msra.mxu0 0
      %322 = vmatprep.subr.bf16.mxu0 0
      %323 = vmatpush1.bf16.msra.mxu0 0
      %324 = vmatprep.subr.bf16.mxu0 0
      %325 = vmatpush1.bf16.msra.mxu0 %v308
      %326 = vmatprep.subr.bf16.mxu0 0
      %327 = vmatpush2.bf16.msra.mxu0 0
      %328 = vmatprep.subr.bf16.mxu0 0
      %329 = vmatpush2.bf16.msra.mxu0 0
      %330 = vmatprep.subr.bf16.mxu0 0
      %331 = vmatpush2.bf16.msra.mxu0 0
      %332 = vmatprep.subr.bf16.mxu0 0
      %333 = vmatpush2.bf16.msra.mxu0 0
      %334 = vmatprep.subr.bf16.mxu0 0
      %335 = vmatpush2.bf16.msra.mxu0 0
      %336 = vmatprep.subr.bf16.mxu0 0
      %337 = vmatpush2.bf16.msra.mxu0 0
      %338 = vmatprep.subr.bf16.mxu0 0
      %339 = vmatpush2.bf16.msra.mxu0 0
      %340 = vmatprep.subr.bf16.mxu0 0
      %341 = vmatpush2.bf16.msra.mxu0 0
      %342 = vmatprep.mubr.bf16.mxu0 0
      %343 = vmatmul.mubr.bf16.gmra.mxu0 %v305
      %v344 = vpop.f32.mrf.mxu0
      %v345 = vadd.f32 0.0, %v344
      %v346 = vpop.f32.mrf.mxu0
      %v347 = vpop.f32.mrf.mxu0
      %v348 = vpop.f32.mrf.mxu0
      %349 = vdwg.mxu0
      %351 = vrot.lane.b32.xlu0 %v345, 8
      %v352 = vpop.permute.xlu0 %351
      %vm354 = vcmask 130112
      %355 = vst.msk [vmem:[%s111] sm:$0xff] %vm354, %v352
      %v356 = vld [vmem:[%s107] sm:$0xff]
      %v357 = vpack.c.bf16 %v356, %v356
      %359 = vrot.lane.b32.xlu0 %v357, 112
      %v360 = vpop.permute.xlu0 %359
      %361 = vrot.lane.b32.xlu0 %v357, 80
      %v362 = vpop.permute.xlu0 %361
      %v364 = vsel %vm124, %v360, 0
      %v367 = vsel %vm124, %v362, 0
      %369 = vmatprep.subr.bf16.mxu0 0
      %370 = vmatpush1.bf16.xpose.msra.mxu0 0
      %371 = vmatprep.subr.bf16.mxu0 0
      %372 = vmatpush1.bf16.xpose.msra.mxu0 0
      %373 = vmatprep.subr.bf16.mxu0 0
      %374 = vmatpush1.bf16.xpose.msra.mxu0 0
      %375 = vmatprep.subr.bf16.mxu0 0
      %376 = vmatpush1.bf16.xpose.msra.mxu0 0
      %377 = vmatprep.subr.bf16.mxu0 0
      %378 = vmatpush1.bf16.xpose.msra.mxu0 0
      %379 = vmatprep.subr.bf16.mxu0 0
      %380 = vmatpush1.bf16.xpose.msra.mxu0 0
      %381 = vmatprep.subr.bf16.mxu0 0
      %382 = vmatpush1.bf16.xpose.msra.mxu0 0
      %383 = vmatprep.subr.bf16.mxu0 0
      %384 = vmatpush1.bf16.xpose.msra.mxu0 %v367
      %385 = vmatprep.subr.bf16.mxu0 0
      %386 = vmatpush2.bf16.xpose.msra.mxu0 0
      %387 = vmatprep.subr.bf16.mxu0 0
      %388 = vmatpush2.bf16.xpose.msra.mxu0 0
      %389 = vmatprep.subr.bf16.mxu0 0
      %390 = vmatpush2.bf16.xpose.msra.mxu0 0
      %391 = vmatprep.subr.bf16.mxu0 0
      %392 = vmatpush2.bf16.xpose.msra.mxu0 0
      %393 = vmatprep.subr.bf16.mxu0 0
      %394 = vmatpush2.bf16.xpose.msra.mxu0 0
      %395 = vmatprep.subr.bf16.mxu0 0
      %396 = vmatpush2.bf16.xpose.msra.mxu0 0
      %397 = vmatprep.subr.bf16.mxu0 0
      %398 = vmatpush2.bf16.xpose.msra.mxu0 0
      %399 = vmatprep.subr.bf16.mxu0 0
      %400 = vmatpush2.bf16.xpose.msra.mxu0 0
      %401 = vmatprep.mubr.bf16.mxu0 0
      %402 = vmatmul.mubr.bf16.gmra.mxu0 %v364
      %v403 = vpop.f32.mrf.mxu0
      %v404 = vadd.f32 0.0, %v403
      %v405 = vpop.f32.mrf.mxu0
      %v406 = vpop.f32.mrf.mxu0
      %v407 = vpop.f32.mrf.mxu0
      %408 = vdwg.mxu0
      %v409 = vmul.f32 %v404, 0.35355338
      %v410 = vadd.f32 %v409, %v118
      %v411 = vsel %vm124, %v410, -inf
      %412 = vmax.xlane.f32.xlu0 %v411
      %v413 = vpop.xlane.xlu0 %412
      %v414 = vsub.f32 %v410, %v413
      %v415 = vmul.f32 %v414, 1.442695
      %v416 = vpow.pop %v415
      %v417 = vsel %vm124, %v416, 0.0
      %418 = vadd.xlane.f32.xlu0 %v417
      %v419 = vpop.xlane.xlu0 %418
      %v420 = vrcp.pop %v419
      %v421 = vmul.f32 %v416, %v420
      %v422 = vpack.c.bf16 %v421, %v421
      %423 = vrot.lane.b32.xlu0 %v357, 48
      %v424 = vpop.permute.xlu0 %423
      %v426 = vsel %vm124, %v422, 0
      %v429 = vsel %vm190, %v424, 0
      %431 = vmatprep.subr.bf16.mxu0 0
      %432 = vmatpush1.bf16.msra.mxu0 0
      %433 = vmatprep.subr.bf16.mxu0 0
      %434 = vmatpush1.bf16.msra.mxu0 0
      %435 = vmatprep.subr.bf16.mxu0 0
      %436 = vmatpush1.bf16.msra.mxu0 0
      %437 = vmatprep.subr.bf16.mxu0 0
      %438 = vmatpush1.bf16.msra.mxu0 0
      %439 = vmatprep.subr.bf16.mxu0 0
      %440 = vmatpush1.bf16.msra.mxu0 0
      %441 = vmatprep.subr.bf16.mxu0 0
      %442 = vmatpush1.bf16.msra.mxu0 0
      %443 = vmatprep.subr.bf16.mxu0 0
      %444 = vmatpush1.bf16.msra.mxu0 0
      %445 = vmatprep.subr.bf16.mxu0 0
      %446 = vmatpush1.bf16.msra.mxu0 %v429
      %447 = vmatprep.subr.bf16.mxu0 0
      %448 = vmatpush2.bf16.msra.mxu0 0
      %449 = vmatprep.subr.bf16.mxu0 0
      %450 = vmatpush2.bf16.msra.mxu0 0
      %451 = vmatprep.subr.bf16.mxu0 0
      %452 = vmatpush2.bf16.msra.mxu0 0
      %453 = vmatprep.subr.bf16.mxu0 0
      %454 = vmatpush2.bf16.msra.mxu0 0
      %455 = vmatprep.subr.bf16.mxu0 0
      %456 = vmatpush2.bf16.msra.mxu0 0
      %457 = vmatprep.subr.bf16.mxu0 0
      %458 = vmatpush2.bf16.msra.mxu0 0
      %459 = vmatprep.subr.bf16.mxu0 0
      %460 = vmatpush2.bf16.msra.mxu0 0
      %461 = vmatprep.subr.bf16.mxu0 0
      %462 = vmatpush2.bf16.msra.mxu0 0
      %463 = vmatprep.mubr.bf16.mxu0 0
      %464 = vmatmul.mubr.bf16.gmra.mxu0 %v426
      %v465 = vpop.f32.mrf.mxu0
      %v466 = vadd.f32 0.0, %v465
      %v467 = vpop.f32.mrf.mxu0
      %v468 = vpop.f32.mrf.mxu0
      %v469 = vpop.f32.mrf.mxu0
      %470 = vdwg.mxu0
      %472 = vrot.lane.b32.xlu0 %v466, 16
      %v473 = vpop.permute.xlu0 %472
      %vm475 = vcmask 195712
      %476 = vst.msk [vmem:[%s111] sm:$0xff] %vm475, %v473
      %v477 = vld [vmem:[%s107] sm:$0xff]
      %v478 = vpack.c.bf16 %v477, %v477
      %480 = vrot.lane.b32.xlu0 %v478, 104
      %v481 = vpop.permute.xlu0 %480
      %482 = vrot.lane.b32.xlu0 %v478, 72
      %v483 = vpop.permute.xlu0 %482
      %v485 = vsel %vm124, %v481, 0
      %v488 = vsel %vm124, %v483, 0
      %490 = vmatprep.subr.bf16.mxu0 0
      %491 = vmatpush1.bf16.xpose.msra.mxu0 0
      %492 = vmatprep.subr.bf16.mxu0 0
      %493 = vmatpush1.bf16.xpose.msra.mxu0 0
      %494 = vmatprep.subr.bf16.mxu0 0
      %495 = vmatpush1.bf16.xpose.msra.mxu0 0
      %496 = vmatprep.subr.bf16.mxu0 0
      %497 = vmatpush1.bf16.xpose.msra.mxu0 0
      %498 = vmatprep.subr.bf16.mxu0 0
      %499 = vmatpush1.bf16.xpose.msra.mxu0 0
      %500 = vmatprep.subr.bf16.mxu0 0
      %501 = vmatpush1.bf16.xpose.msra.mxu0 0
      %502 = vmatprep.subr.bf16.mxu0 0
      %503 = vmatpush1.bf16.xpose.msra.mxu0 0
      %504 = vmatprep.subr.bf16.mxu0 0
      %505 = vmatpush1.bf16.xpose.msra.mxu0 %v488
      %506 = vmatprep.subr.bf16.mxu0 0
      %507 = vmatpush2.bf16.xpose.msra.mxu0 0
      %508 = vmatprep.subr.bf16.mxu0 0
      %509 = vmatpush2.bf16.xpose.msra.mxu0 0
      %510 = vmatprep.subr.bf16.mxu0 0
      %511 = vmatpush2.bf16.xpose.msra.mxu0 0
      %512 = vmatprep.subr.bf16.mxu0 0
      %513 = vmatpush2.bf16.xpose.msra.mxu0 0
      %514 = vmatprep.subr.bf16.mxu0 0
      %515 = vmatpush2.bf16.xpose.msra.mxu0 0
      %516 = vmatprep.subr.bf16.mxu0 0
      %517 = vmatpush2.bf16.xpose.msra.mxu0 0
      %518 = vmatprep.subr.bf16.mxu0 0
      %519 = vmatpush2.bf16.xpose.msra.mxu0 0
      %520 = vmatprep.subr.bf16.mxu0 0
      %521 = vmatpush2.bf16.xpose.msra.mxu0 0
      %522 = vmatprep.mubr.bf16.mxu0 0
      %523 = vmatmul.mubr.bf16.gmra.mxu0 %v485
      %v524 = vpop.f32.mrf.mxu0
      %v525 = vadd.f32 0.0, %v524
      %v526 = vpop.f32.mrf.mxu0
      %v527 = vpop.f32.mrf.mxu0
      %v528 = vpop.f32.mrf.mxu0
      %529 = vdwg.mxu0
      %v530 = vmul.f32 %v525, 0.35355338
      %v531 = vadd.f32 %v530, %v118
      %v532 = vsel %vm124, %v531, -inf
      %533 = vmax.xlane.f32.xlu0 %v532
      %v534 = vpop.xlane.xlu0 %533
      %v535 = vsub.f32 %v531, %v534
      %v536 = vmul.f32 %v535, 1.442695
      %v537 = vpow.pop %v536
      %v538 = vsel %vm124, %v537, 0.0
      %539 = vadd.xlane.f32.xlu0 %v538
      %v540 = vpop.xlane.xlu0 %539
      %v541 = vrcp.pop %v540
      %v542 = vmul.f32 %v537, %v541
      %v543 = vpack.c.bf16 %v542, %v542
      %544 = vrot.lane.b32.xlu0 %v478, 40
      %v545 = vpop.permute.xlu0 %544
      %v547 = vsel %vm124, %v543, 0
      %v550 = vsel %vm190, %v545, 0
      %552 = vmatprep.subr.bf16.mxu0 0
      %553 = vmatpush1.bf16.msra.mxu0 0
      %554 = vmatprep.subr.bf16.mxu0 0
      %555 = vmatpush1.bf16.msra.mxu0 0
      %556 = vmatprep.subr.bf16.mxu0 0
      %557 = vmatpush1.bf16.msra.mxu0 0
      %558 = vmatprep.subr.bf16.mxu0 0
      %559 = vmatpush1.bf16.msra.mxu0 0
      %560 = vmatprep.subr.bf16.mxu0 0
      %561 = vmatpush1.bf16.msra.mxu0 0
      %562 = vmatprep.subr.bf16.mxu0 0
      %563 = vmatpush1.bf16.msra.mxu0 0
      %564 = vmatprep.subr.bf16.mxu0 0
      %565 = vmatpush1.bf16.msra.mxu0 0
      %566 = vmatprep.subr.bf16.mxu0 0
      %567 = vmatpush1.bf16.msra.mxu0 %v550
      %568 = vmatprep.subr.bf16.mxu0 0
      %569 = vmatpush2.bf16.msra.mxu0 0
      %570 = vmatprep.subr.bf16.mxu0 0
      %571 = vmatpush2.bf16.msra.mxu0 0
      %572 = vmatprep.subr.bf16.mxu0 0
      %573 = vmatpush2.bf16.msra.mxu0 0
      %574 = vmatprep.subr.bf16.mxu0 0
      %575 = vmatpush2.bf16.msra.mxu0 0
      %576 = vmatprep.subr.bf16.mxu0 0
      %577 = vmatpush2.bf16.msra.mxu0 0
      %578 = vmatprep.subr.bf16.mxu0 0
      %579 = vmatpush2.bf16.msra.mxu0 0
      %580 = vmatprep.subr.bf16.mxu0 0
      %581 = vmatpush2.bf16.msra.mxu0 0
      %582 = vmatprep.subr.bf16.mxu0 0
      %583 = vmatpush2.bf16.msra.mxu0 0
      %584 = vmatprep.mubr.bf16.mxu0 0
      %585 = vmatmul.mubr.bf16.gmra.mxu0 %v547
      %v586 = vpop.f32.mrf.mxu0
      %v587 = vadd.f32 0.0, %v586
      %v588 = vpop.f32.mrf.mxu0
      %v589 = vpop.f32.mrf.mxu0
      %v590 = vpop.f32.mrf.mxu0
      %591 = vdwg.mxu0
      %593 = vrot.lane.b32.xlu0 %v587, 24
      %v594 = vpop.permute.xlu0 %593
      %vm596 = vcmask 261312
      %597 = vst.msk [vmem:[%s111] sm:$0xff] %vm596, %v594
      %p598 = scmp.lt.s32.totalorder %s12, 1
      %s599 = scalar_select %p598, %s12, 1
      %s600 = smul.addr %s599, 8
      %s601 = scalar_lea.vmem %s1, %s600
      // Predicated region
      $region25: #{gpt_forward.16} parent=23 // pred_check
        %p602 = pneg %p56
      $region26: #{gpt_forward.16} parent=23 // pred_check_branch
        %604 = sbr.rel (%p602) target = $region28
      $region27: #{gpt_forward.16} parent=23 // pred_region
        _
      $region28: #{gpt_forward.16} parent=23 // pred_fallthru
        _
    $region24: #{gpt_forward.16} parent=5 // pred_fallthru
      _
    %p605 = scmp.le.s32.totalorder 2, %s7
    // Predicated region
    $region29: #{gpt_forward.16} parent=5 // pred_check
      %p606 = pneg %p605
    $region30: #{gpt_forward.16} parent=5 // pred_check_branch
      %608 = sbr.rel (%p606) target = $region32
    $region31: #{gpt_forward.16} parent=5 // pred_region
      %s609 = ssub.s32 %s7, 2
      // Predicated region
      $region33: #{gpt_forward.16} parent=31 // pred_check
        %p610 = pneg %p62
      $region34: #{gpt_forward.16} parent=31 // pred_check_branch
        %612 = sbr.rel (%p610) target = $region36
      $region35: #{gpt_forward.16} parent=31 // pred_region
        %p613 = scmp.lt.s32.totalorder %s13, 1
        %s614 = scalar_select %p613, %s13, 1
        %s615 = smul.addr %s614, 8
        %s616 = scalar_lea.vmem %s1, %s615
      $region36: #{gpt_forward.16} parent=31 // pred_fallthru
        _
    $region32: #{gpt_forward.16} parent=5 // pred_fallthru
      _
  $region6: #{gpt_forward.16} parent=0 // loop_footer
    %s11 = sadd.s32 1, %s7
  $region7: #{gpt_forward.16} parent=0 // loop_footer_branch
    %6 = sbr.rel target = $region3
  $region8: #{gpt_forward.16} parent=0 // loop_exit
    _

// kernel: gpt_forward.29
$region0: #{gpt_forward.29}
  #allocation0 [shape = 'u32[]', space=smem, size = 0x4, offset = 0x4, fixed_abs, tag = 'smem constant byte address 0x4 - core index']
  #allocation1 [shape = 'u32[144,128]{1,0:T(1,128)}', space=vmem, size = 0x12000, scoped, tag = 'internal scratch']
  #allocation2 [shape = 'f32[16,128]{1,0:T(8,128)}', space=vmem, size = 0x2000, scoped, tag = 'scratch operand']
  %s0 = inlined_call_operand.vmem [shape: bf16[16,32], index: 0, kind: input, shape index: {}]
  %s1 = inlined_call_operand.vmem [shape: bf16[32,128], index: 1, kind: input, shape index: {}]
  %s2 = inlined_call_operand.vmem [shape: f32[1,128], index: 2, kind: input, shape index: {}]
  %s3 = inlined_call_operand.vmem [shape: f32[16,128], index: 3, kind: output, shape index: {}]
  %s4 = sld [smem:[#allocation0]]
  $region30: #{gpt_forward.29} parent=0
    _
  %s6 = ssub.s32 1, %s4
  %s7 = scalar_select 0, %s6, %s4
  // Predicated region
  $region2: #{gpt_forward.29} parent=0 // pred_check
    _
  $region3: #{gpt_forward.29} parent=0 // pred_check_branch
    %9 = sbr.rel (0) target = $region5
  $region4: #{gpt_forward.29} parent=0 // pred_region
    _
  $region5: #{gpt_forward.29} parent=0 // pred_fallthru
    _
  // Predicated region
  $region6: #{gpt_forward.29} parent=0 // pred_check
    _
  $region7: #{gpt_forward.29} parent=0 // pred_check_branch
    %11 = sbr.rel (0) target = $region9
  $region8: #{gpt_forward.29} parent=0 // pred_region
    _
  $region9: #{gpt_forward.29} parent=0 // pred_fallthru
    _
  // Predicated region
  $region10: #{gpt_forward.29} parent=0 // pred_check
    _
  $region11: #{gpt_forward.29} parent=0 // pred_check_branch
    %13 = sbr.rel (0) target = $region13
  $region12: #{gpt_forward.29} parent=0 // pred_region
    _
  $region13: #{gpt_forward.29} parent=0 // pred_fallthru
    _
  %p15 = scmp.eq.s32.totalorder 0, 0
  // Predicated region
  $region14: #{gpt_forward.29} parent=0 // pred_check
    %p16 = pneg %p15
  $region15: #{gpt_forward.29} parent=0 // pred_check_branch
    %18 = sbr.rel (%p16) target = $region17
  $region16: #{gpt_forward.29} parent=0 // pred_region
    %19 = vst [vmem:[#allocation2] sm:$0xff] 0.0
    %20 = vst [vmem:[#allocation2 + $0x8] sm:$0xff] 0.0
  $region17: #{gpt_forward.29} parent=0 // pred_fallthru
    _
  %v21 = vld [vmem:[#allocation2] sm:$0xff]
  %v22 = vld [vmem:[#allocation2 + $0x8] sm:$0xff]
  %v23 = vld [vmem:[%s0] sm:$0xf]
  %v24 = vld [vmem:[%s0 + $0x4] sm:$0xf]
  %v25 = vld [vmem:[%s1] sm:$0xf]
  %v26 = vld [vmem:[%s1 + $0x4] sm:$0xf]
  %v27 = vld [vmem:[%s1 + $0x8] sm:$0xf]
  %v28 = vld [vmem:[%s1 + $0xc] sm:$0xf]
  %v31 = vunpack.c.l.b16 %v23
  %v32 = vunpack.c.l.b16 %v24
  %v33 = vpack.c.b16 %v32, %v31
  %v38 = vunpack.c.l.b16 %v25
  %v39 = vunpack.c.l.b16 %v26
  %v40 = vunpack.c.l.b16 %v27
  %v41 = vunpack.c.l.b16 %v28
  %v42 = vpack.c.b16 %v39, %v38
  %v43 = vpack.c.b16 %v41, %v40
  %vm46 = vcmask 261120
  %v48 = vsel %vm46, %v33, 0
  %50 = vmatprep.subr.bf16.mxu0 0
  %51 = vmatpush1.bf16.msra.mxu0 0
  %52 = vmatprep.subr.bf16.mxu0 0
  %53 = vmatpush1.bf16.msra.mxu0 0
  %54 = vmatprep.subr.bf16.mxu0 0
  %55 = vmatpush1.bf16.msra.mxu0 0
  %56 = vmatprep.subr.bf16.mxu0 0
  %57 = vmatpush1.bf16.msra.mxu0 0
  %58 = vmatprep.subr.bf16.mxu0 0
  %59 = vmatpush1.bf16.msra.mxu0 0
  %60 = vmatprep.subr.bf16.mxu0 0
  %61 = vmatpush1.bf16.msra.mxu0 0
  %62 = vmatprep.subr.bf16.mxu0 0
  %63 = vmatpush1.bf16.msra.mxu0 %v43
  %64 = vmatprep.subr.bf16.mxu0 0
  %65 = vmatpush1.bf16.msra.mxu0 %v42
  %66 = vmatprep.subr.bf16.mxu0 0
  %67 = vmatpush2.bf16.msra.mxu0 0
  %68 = vmatprep.subr.bf16.mxu0 0
  %69 = vmatpush2.bf16.msra.mxu0 0
  %70 = vmatprep.subr.bf16.mxu0 0
  %71 = vmatpush2.bf16.msra.mxu0 0
  %72 = vmatprep.subr.bf16.mxu0 0
  %73 = vmatpush2.bf16.msra.mxu0 0
  %74 = vmatprep.subr.bf16.mxu0 0
  %75 = vmatpush2.bf16.msra.mxu0 0
  %76 = vmatprep.subr.bf16.mxu0 0
  %77 = vmatpush2.bf16.msra.mxu0 0
  %78 = vmatprep.subr.bf16.mxu0 0
  %79 = vmatpush2.bf16.msra.mxu0 0
  %80 = vmatprep.subr.bf16.mxu0 0
  %81 = vmatpush2.bf16.msra.mxu0 0
  %82 = vmatprep.mubr.bf16.mxu0 0
  %83 = vmatmul.mubr.bf16.gmra.mxu0 %v48
  %v84 = vpop.f32.mrf.mxu0
  %v85 = vadd.f32 0.0, %v84
  %v86 = vpop.f32.mrf.mxu0
  %v87 = vpop.f32.mrf.mxu0
  %v88 = vadd.f32 0.0, %v87
  %v89 = vpop.f32.mrf.mxu0
  %90 = vdwg.mxu0
  %v91 = vadd.f32 %v21, %v85
  %v92 = vadd.f32 %v22, %v88
  %93 = vst [vmem:[#allocation2] sm:$0xff] %v91
  %94 = vst [vmem:[#allocation2 + $0x8] sm:$0xff] %v92
  // Predicated region
  $region18: #{gpt_forward.29} parent=0 // pred_check
    %p95 = pneg %p15
  $region19: #{gpt_forward.29} parent=0 // pred_check_branch
    %97 = sbr.rel (%p95) target = $region21
  $region20: #{gpt_forward.29} parent=0 // pred_region
    %v98 = vld [vmem:[#allocation2] sm:$0xff]
    %v99 = vld [vmem:[#allocation2 + $0x8] sm:$0xff]
    %v100 = vld [vmem:[%s2] sm:$0x1]
    %v102 = vlaneseq
    %v103 = vshrl.u32 %v102, 7
    %v104 = vsub.s32 0, %v103
    %v105 = vrot.slane %v100, %v104
    %v107 = vadd.f32 %v98, %v105
    %v108 = vadd.f32 %v99, %v105
    %v109 = vlaneseq
    %v110 = vand.u32 %v109, 127
    %vm111 = vcmp.lt.s32.totalorder %v110, 32
    %v112 = vsel %vm111, %v107, -1e+30
    %v113 = vsel %vm111, %v108, -1e+30
    %114 = vmax.xlane.f32.xlu0 %v112
    %v115 = vpop.xlane.xlu0 %114
    %116 = vmax.xlane.f32.xlu0 %v113
    %v117 = vpop.xlane.xlu0 %116
    %v118 = vsub.f32 %v112, %v115
    %v119 = vsub.f32 %v113, %v117
    %v120 = vmul.f32 %v118, 1.442695
    %v121 = vpow.pop %v120
    %v122 = vmul.f32 %v119, 1.442695
    %v123 = vpow.pop %v122
    %124 = vadd.xlane.f32.xlu0 %v121
    %v125 = vpop.xlane.xlu0 %124
    %126 = vadd.xlane.f32.xlu0 %v123
    %v127 = vpop.xlane.xlu0 %126
    %v128 = vrcp.pop %v125
    %v129 = vmul.f32 %v121, %v128
    %v130 = vrcp.pop %v127
    %v131 = vmul.f32 %v123, %v130
    %132 = vst [vmem:[%s3] sm:$0xff] %v129
    %133 = vst [vmem:[%s3 + $0x8] sm:$0xff] %v131
  $region21: #{gpt_forward.29} parent=0 // pred_fallthru
    _
  // Predicated region
  $region22: #{gpt_forward.29} parent=0 // pred_check
    _
  $region23: #{gpt_forward.29} parent=0 // pred_check_branch
    %135 = sbr.rel (0) target = $region25
  $region24: #{gpt_forward.29} parent=0 // pred_region
    _
  $region25: #{gpt_forward.29} parent=0 // pred_fallthru
    _
  // Predicated region
  $region26: #{gpt_forward.29} parent=0 // pred_check
    _
  $region27: #{gpt_forward.29} parent=0 // pred_check_branch
    %137 = sbr.rel (0) target = $region29
  $region28: #{gpt_forward.29} parent=0 // pred_region
    _
  $region29: #{gpt_forward.29} parent=0 // pred_fallthru
    _

// kernel: gpt_forward.20
$region0: #{gpt_forward.20}
  #allocation0 [shape = 'u32[]', space=smem, size = 0x4, offset = 0x4, fixed_abs, tag = 'smem constant byte address 0x4 - core index']
  #allocation1 [shape = 'u32[144,128]{1,0:T(1,128)}', space=vmem, size = 0x12000, scoped, tag = 'internal scratch']
  #allocation2 [shape = 'f32[16,128]{1,0:T(8,128)}', space=vmem, size = 0x2000, scoped, tag = 'scratch operand']
  %s0 = inlined_call_operand.vmem [shape: bf16[16,128], index: 0, kind: input, shape index: {}]
  %s1 = inlined_call_operand.vmem [shape: bf16[128,128], index: 1, kind: input, shape index: {}]
  %s2 = inlined_call_operand.vmem [shape: f32[1,128], index: 2, kind: input, shape index: {}]
  %s3 = inlined_call_operand.vmem [shape: f32[16,128], index: 3, kind: output, shape index: {}]
  %s4 = sld [smem:[#allocation0]]
  $region30: #{gpt_forward.20} parent=0
    _
  %s6 = ssub.s32 1, %s4
  %s7 = scalar_select 0, %s6, %s4
  // Predicated region
  $region2: #{gpt_forward.20} parent=0 // pred_check
    _
  $region3: #{gpt_forward.20} parent=0 // pred_check_branch
    %9 = sbr.rel (0) target = $region5
  $region4: #{gpt_forward.20} parent=0 // pred_region
    _
  $region5: #{gpt_forward.20} parent=0 // pred_fallthru
    _
  // Predicated region
  $region6: #{gpt_forward.20} parent=0 // pred_check
    _
  $region7: #{gpt_forward.20} parent=0 // pred_check_branch
    %11 = sbr.rel (0) target = $region9
  $region8: #{gpt_forward.20} parent=0 // pred_region
    _
  $region9: #{gpt_forward.20} parent=0 // pred_fallthru
    _
  // Predicated region
  $region10: #{gpt_forward.20} parent=0 // pred_check
    _
  $region11: #{gpt_forward.20} parent=0 // pred_check_branch
    %13 = sbr.rel (0) target = $region13
  $region12: #{gpt_forward.20} parent=0 // pred_region
    _
  $region13: #{gpt_forward.20} parent=0 // pred_fallthru
    _
  %p15 = scmp.eq.s32.totalorder 0, 0
  // Predicated region
  $region14: #{gpt_forward.20} parent=0 // pred_check
    %p16 = pneg %p15
  $region15: #{gpt_forward.20} parent=0 // pred_check_branch
    %18 = sbr.rel (%p16) target = $region17
  $region16: #{gpt_forward.20} parent=0 // pred_region
    %19 = vst [vmem:[#allocation2] sm:$0xff] 0.0
    %20 = vst [vmem:[#allocation2 + $0x8] sm:$0xff] 0.0
  $region17: #{gpt_forward.20} parent=0 // pred_fallthru
    _
  %v21 = vld [vmem:[#allocation2] sm:$0xff]
  %v22 = vld [vmem:[#allocation2 + $0x8] sm:$0xff]
  %v23 = vld [vmem:[%s0] sm:$0xf]
  %v24 = vld [vmem:[%s0 + $0x4] sm:$0xf]
  %v25 = vld [vmem:[%s1] sm:$0xf]
  %v26 = vld [vmem:[%s1 + $0x4] sm:$0xf]
  %v27 = vld [vmem:[%s1 + $0x8] sm:$0xf]
  %v28 = vld [vmem:[%s1 + $0xc] sm:$0xf]
  %v29 = vld [vmem:[%s1 + $0x10] sm:$0xf]
  %v30 = vld [vmem:[%s1 + $0x14] sm:$0xf]
  %v31 = vld [vmem:[%s1 + $0x18] sm:$0xf]
  %v32 = vld [vmem:[%s1 + $0x1c] sm:$0xf]
  %v33 = vld [vmem:[%s1 + $0x20] sm:$0xf]
  %v34 = vld [vmem:[%s1 + $0x24] sm:$0xf]
  %v35 = vld [vmem:[%s1 + $0x28] sm:$0xf]
  %v36 = vld [vmem:[%s1 + $0x2c] sm:$0xf]
  %v37 = vld [vmem:[%s1 + $0x30] sm:$0xf]
  %v38 = vld [vmem:[%s1 + $0x34] sm:$0xf]
  %v39 = vld [vmem:[%s1 + $0x38] sm:$0xf]
  %v40 = vld [vmem:[%s1 + $0x3c] sm:$0xf]
  %v43 = vunpack.c.l.b16 %v23
  %v44 = vunpack.c.l.b16 %v24
  %v45 = vpack.c.b16 %v44, %v43
  %v63 = vunpack.c.l.b16 %v25
  %v64 = vunpack.c.l.b16 %v26
  %v65 = vunpack.c.l.b16 %v27
  %v66 = vunpack.c.l.b16 %v28
  %v67 = vunpack.c.l.b16 %v29
  %v68 = vunpack.c.l.b16 %v30
  %v69 = vunpack.c.l.b16 %v31
  %v70 = vunpack.c.l.b16 %v32
  %v71 = vunpack.c.l.b16 %v33
  %v72 = vunpack.c.l.b16 %v34
  %v73 = vunpack.c.l.b16 %v35
  %v74 = vunpack.c.l.b16 %v36
  %v75 = vunpack.c.l.b16 %v37
  %v76 = vunpack.c.l.b16 %v38
  %v77 = vunpack.c.l.b16 %v39
  %v78 = vunpack.c.l.b16 %v40
  %v79 = vpack.c.b16 %v64, %v63
  %v80 = vpack.c.b16 %v66, %v65
  %v81 = vpack.c.b16 %v68, %v67
  %v82 = vpack.c.b16 %v70, %v69
  %v83 = vpack.c.b16 %v72, %v71
  %v84 = vpack.c.b16 %v74, %v73
  %v85 = vpack.c.b16 %v76, %v75
  %v86 = vpack.c.b16 %v78, %v77
  %95 = vmatprep.subr.bf16.mxu0 0
  %96 = vmatpush1.bf16.msra.mxu0 %v86
  %97 = vmatprep.subr.bf16.mxu0 0
  %98 = vmatpush1.bf16.msra.mxu0 %v85
  %99 = vmatprep.subr.bf16.mxu0 0
  %100 = vmatpush1.bf16.msra.mxu0 %v84
  %101 = vmatprep.subr.bf16.mxu0 0
  %102 = vmatpush1.bf16.msra.mxu0 %v83
  %103 = vmatprep.subr.bf16.mxu0 0
  %104 = vmatpush1.bf16.msra.mxu0 %v82
  %105 = vmatprep.subr.bf16.mxu0 0
  %106 = vmatpush1.bf16.msra.mxu0 %v81
  %107 = vmatprep.subr.bf16.mxu0 0
  %108 = vmatpush1.bf16.msra.mxu0 %v80
  %109 = vmatprep.subr.bf16.mxu0 0
  %110 = vmatpush1.bf16.msra.mxu0 %v79
  %111 = vmatprep.subr.bf16.mxu0 0
  %112 = vmatpush2.bf16.msra.mxu0 0
  %113 = vmatprep.subr.bf16.mxu0 0
  %114 = vmatpush2.bf16.msra.mxu0 0
  %115 = vmatprep.subr.bf16.mxu0 0
  %116 = vmatpush2.bf16.msra.mxu0 0
  %117 = vmatprep.subr.bf16.mxu0 0
  %118 = vmatpush2.bf16.msra.mxu0 0
  %119 = vmatprep.subr.bf16.mxu0 0
  %120 = vmatpush2.bf16.msra.mxu0 0
  %121 = vmatprep.subr.bf16.mxu0 0
  %122 = vmatpush2.bf16.msra.mxu0 0
  %123 = vmatprep.subr.bf16.mxu0 0
  %124 = vmatpush2.bf16.msra.mxu0 0
  %125 = vmatprep.subr.bf16.mxu0 0
  %126 = vmatpush2.bf16.msra.mxu0 0
  %127 = vmatprep.mubr.bf16.mxu0 0
  %128 = vmatmul.mubr.bf16.gmra.mxu0 %v45
  %v129 = vpop.f32.mrf.mxu0
  %v130 = vadd.f32 0.0, %v129
  %v131 = vpop.f32.mrf.mxu0
  %v132 = vpop.f32.mrf.mxu0
  %v133 = vadd.f32 0.0, %v132
  %v134 = vpop.f32.mrf.mxu0
  %135 = vdwg.mxu0
  %v136 = vadd.f32 %v21, %v130
  %v137 = vadd.f32 %v22, %v133
  %138 = vst [vmem:[#allocation2] sm:$0xff] %v136
  %139 = vst [vmem:[#allocation2 + $0x8] sm:$0xff] %v137
  // Predicated region
  $region18: #{gpt_forward.20} parent=0 // pred_check
    %p140 = pneg %p15
  $region19: #{gpt_forward.20} parent=0 // pred_check_branch
    %142 = sbr.rel (%p140) target = $region21
  $region20: #{gpt_forward.20} parent=0 // pred_region
    %v143 = vld [vmem:[#allocation2] sm:$0xff]
    %v144 = vld [vmem:[#allocation2 + $0x8] sm:$0xff]
    %v145 = vld [vmem:[%s2] sm:$0x1]
    %v147 = vlaneseq
    %v148 = vshrl.u32 %v147, 7
    %v149 = vsub.s32 0, %v148
    %v150 = vrot.slane %v145, %v149
    %v152 = vadd.f32 %v143, %v150
    %v153 = vadd.f32 %v144, %v150
    %154 = vst [vmem:[%s3] sm:$0xff] %v152
    %155 = vst [vmem:[%s3 + $0x8] sm:$0xff] %v153
  $region21: #{gpt_forward.20} parent=0 // pred_fallthru
    _
  // Predicated region
  $region22: #{gpt_forward.20} parent=0 // pred_check
    _
  $region23: #{gpt_forward.20} parent=0 // pred_check_branch
    %157 = sbr.rel (0) target = $region25
  $region24: #{gpt_forward.20} parent=0 // pred_region
    _
  $region25: #{gpt_forward.20} parent=0 // pred_fallthru
    _
  // Predicated region
  $region26: #{gpt_forward.20} parent=0 // pred_check
    _
  $region27: #{gpt_forward.20} parent=0 // pred_check_branch
    %159 = sbr.rel (0) target = $region29
  $region28: #{gpt_forward.20} parent=0 // pred_region
    _
  $region29: #{gpt_forward.20} parent=0 // pred_fallthru
    _

</llo_original>
